<compile_context>
chip_gen: v7x
topology: tpu7x:2x2x1
jax: 0.10.0
libtpu: 0.0.40
codegen_flags: <defaults>
</compile_context>

<pallas_src>
import functools

import jax
import jax.numpy as jnp
from jax.experimental import pallas as pl
from jax.experimental.pallas import tpu as pltpu


def _diffusion_gcn_kernel(x_ref, adj_ref, w_ref, b_ref, o_ref, *,
                          diffusion_step, shared_adj, compute_dtype):
    # x_ref  : (Bt, C, N, T)  batch tile in the module's native layout
    # adj_ref: (1, N, N) shared  or  (Bt, N, N) per-batch, compute_dtype
    # w_ref  : (K, C_out, C_in) 1x1-conv weight, compute_dtype
    # b_ref  : (C, 1)           1x1-conv bias, f32
    # o_ref  : (Bt, C, N, T)    output, native layout
    Bt, C, N, T = x_ref.shape
    K = diffusion_step

    # Cast first (so the transpose moves the narrow dtype), then do the
    # (N, T) -> (T, N) minor-dim swap in VMEM so nodes N sit on the lane axis
    # for both contractions.  No wrapper-side HBM transpose passes.
    x = x_ref[...].astype(compute_dtype)          # (Bt, C, N, T)
    xt = jnp.swapaxes(x, -1, -2)                  # (Bt, C, T, N)

    w = w_ref[...]                                # (K, C_out, C_in)
    bias = b_ref[...][:, :, None]                 # (C, 1, 1) f32

    if shared_adj:
        adj = adj_ref[0]                          # (N, N)
        # Joint diffusion chain over the whole tile: one dot per step.
        cur = xt.reshape(Bt * C, T, N)            # free leading-dim merge
        curs = []
        for _ in range(K):
            cur = jax.lax.dot_general(
                cur, adj, (((2,), (0,)), ((), ())),
                preferred_element_type=jnp.float32).astype(compute_dtype)
            curs.append(cur)
        # Fused 1x1 conv + bias + back-transpose + store, one batch element at
        # a time: only a single f32 temporary is live, and the output leaves
        # the kernel already in the module's native (C, N, T) layout.
        for b in range(Bt):
            y = jnp.zeros((C, T, N), jnp.float32)
            for k in range(K):
                y = y + jax.lax.dot_general(
                    w[k], curs[k][b * C:(b + 1) * C],
                    (((1,), (0,)), ((), ())),
                    preferred_element_type=jnp.float32)
            y = (y + bias).astype(o_ref.dtype)
            o_ref[b] = jnp.swapaxes(y, -1, -2)    # (C, N, T)
    else:
        adj = adj_ref[...]                        # (Bt, N, N)
        for b in range(Bt):
            cur = xt[b]                           # (C, T, N)
            a_b = adj[b]                          # (N, N)
            y = jnp.zeros((C, T, N), jnp.float32)
            for k in range(K):
                cur = jax.lax.dot_general(
                    cur, a_b, (((2,), (0,)), ((), ())),
                    preferred_element_type=jnp.float32).astype(compute_dtype)
                y = y + jax.lax.dot_general(
                    w[k], cur, (((1,), (0,)), ((), ())),
                    preferred_element_type=jnp.float32)
            y = (y + bias).astype(o_ref.dtype)
            o_ref[b] = jnp.swapaxes(y, -1, -2)
    # Dropout: identity (eval mode).
    # TODO(synk): training-mode dropout would use pltpu.prng_seed / stateful_bernoulli.


def _round_up(v, m):
    return -(-v // m) * m


def _sublane_mult(itemsize):
    # Second-minor (sublane) padding granularity per dtype width.
    return max(8, 32 // itemsize)


def _vmem_capacity_bytes():
    """Per-core VMEM capacity; conservative fallback if the query fails."""
    try:
        info = pltpu.get_tpu_info()
        cap = int(getattr(info, "vmem_capacity_bytes", 0) or 0)
        if cap > 0:
            return cap
    except Exception:
        pass
    return 64 * 1024 * 1024        # v7x-sized fallback


def _estimate_vmem_bytes(bt, C, N, T, K, in_isz, out_isz, cd_isz, per_batch_adj):
    """Conservative VMEM footprint for one grid step, on *padded* shapes."""
    lane_t = _round_up(T, 128)      # native (.., N, T) blocks: T on lanes
    lane_n = _round_up(N, 128)      # working (.., T, N) values / adj: N on lanes
    lane_c = _round_up(C, 128)
    # Pipelined (double-buffered) HBM<->VMEM block buffers.
    x_blk = bt * C * _round_up(N, _sublane_mult(in_isz)) * lane_t * in_isz
    o_blk = bt * C * _round_up(N, _sublane_mult(out_isz)) * lane_t * out_isz
    a_blk = ((bt if per_batch_adj else 1)
             * _round_up(N, _sublane_mult(cd_isz)) * lane_n * cd_isz)
    w_blk = K * _round_up(C, _sublane_mult(cd_isz)) * lane_c * cd_isz
    b_blk = _round_up(C, 8) * 128 * 4
    pipelined = 2 * (x_blk + o_blk + a_blk + w_blk + b_blk)
    # In-kernel live values: cast+transposed input plus the K chain outputs
    # (compute dtype), and the f32 conv temporary / epilogue value.
    sub_t = _round_up(T, _sublane_mult(cd_isz))
    work = bt * C * sub_t * lane_n * cd_isz * (K + 2)
    work += C * _round_up(T, 8) * lane_n * 4 * 2
    return pipelined + work


def _choose_batch_tile(B, C, N, T, K, in_isz, out_isz, cd_isz,
                       per_batch_adj, budget, max_tile=16):
    """Largest batch tile that fits the VMEM budget, preferring >=4 grid steps
    (pipeline overlap), then an even >=2 grid (megacore on v7x)."""
    fits = [bt for bt in range(1, min(B, max_tile) + 1)
            if B % bt == 0
            and _estimate_vmem_bytes(bt, C, N, T, K, in_isz, out_isz,
                                     cd_isz, per_batch_adj) <= budget]
    if not fits:
        return 1
    for pred in (lambda bt: B // bt >= 4,
                 lambda bt: B // bt >= 2 and (B // bt) % 2 == 0,
                 lambda bt: B // bt >= 2,
                 lambda bt: True):
        sel = [bt for bt in fits if pred(bt)]
        if sel:
            return max(sel)
    return 1


def diffusion_gcn(x, adj, weight, bias, *, diffusion_step=1,
                  compute_dtype=jnp.bfloat16, out_dtype=None, batch_tile=None):
    """x: (B, C, N, T); adj: (N, N) or (B, N, N); weight: (C, K*C) (1x1-conv
    kernel already squeezed from (C, K*C, 1, 1)); bias: (C,).
    Returns (B, C, N, T) in out_dtype (default: x.dtype).  compute_dtype is the
    MXU operand precision; accumulation is always f32."""
    B, C, N, T = x.shape
    K = diffusion_step
    assert weight.shape == (C, K * C)
    assert bias.shape == (C,)
    shared_adj = (adj.ndim == 2)
    if not shared_adj:
        assert adj.shape == (B, N, N)

    out_dtype = jnp.dtype(x.dtype) if out_dtype is None else jnp.dtype(out_dtype)

    # Generation-aware VMEM limits: ~100 MiB on 128 MiB parts (v5e/v6e),
    # ~44 MiB on 64 MiB parts (v7x per TensorCore).
    cap = _vmem_capacity_bytes()
    vmem_limit = max(32 * 2**20, min(cap - 20 * 2**20, 100 * 2**20))
    budget = max(16 * 2**20, vmem_limit - 12 * 2**20)

    in_isz = jnp.dtype(x.dtype).itemsize
    out_isz = out_dtype.itemsize
    cd_isz = jnp.dtype(compute_dtype).itemsize

    if batch_tile is None:
        batch_tile = _choose_batch_tile(B, C, N, T, K, in_isz, out_isz, cd_isz,
                                        not shared_adj, budget)
    Bt = batch_tile
    assert B % Bt == 0, "batch_tile must divide the batch size"
    grid = (B // Bt,)

    if shared_adj:
        adj_k = adj.astype(compute_dtype)[None]                    # (1, N, N)
        adj_spec = pl.BlockSpec((1, N, N), lambda i: (0, 0, 0))    # grid-invariant
    else:
        adj_k = adj.astype(compute_dtype)                          # (B, N, N)
        adj_spec = pl.BlockSpec((Bt, N, N), lambda i: (i, 0, 0))

    # (C_out, K*C_in) -> (K, C_out, C_in): W_k selection is a free leading index.
    w_k = jnp.transpose(weight.reshape(C, K, C), (1, 0, 2)).astype(compute_dtype)
    b_k = bias.reshape(C, 1).astype(jnp.float32)

    kernel = functools.partial(
        _diffusion_gcn_kernel, diffusion_step=K, shared_adj=shared_adj,
        compute_dtype=compute_dtype)

    return pl.pallas_call(
        kernel,
        out_shape=jax.ShapeDtypeStruct((B, C, N, T), out_dtype),
        grid_spec=pltpu.PrefetchScalarGridSpec(
            num_scalar_prefetch=0,
            grid=grid,
            in_specs=[
                pl.BlockSpec((Bt, C, N, T), lambda i: (i, 0, 0, 0)),  # native layout
                adj_spec,
                pl.BlockSpec((K, C, C), lambda i: (0, 0, 0)),         # grid-invariant
                pl.BlockSpec((C, 1), lambda i: (0, 0)),               # grid-invariant
            ],
            out_specs=pl.BlockSpec((Bt, C, N, T), lambda i: (i, 0, 0, 0)),
        ),
        compiler_params=pltpu.CompilerParams(
            dimension_semantics=("parallel",),
            vmem_limit_bytes=int(vmem_limit),
        ),
    )(x, adj_k, w_k, b_k)


def diffusion_gcn_ref(x, adj, weight, bias, *, diffusion_step=1):
    """Pure-JAX f32 reference matching the PyTorch forward (eval mode)."""
    outs = []
    cur = x
    for _ in range(diffusion_step):
        if adj.ndim == 3:
            cur = jnp.einsum('bcnt,bnm->bcmt', cur, adj)
        else:
            cur = jnp.einsum('bcnt,nm->bcmt', cur, adj)
        outs.append(cur)
    cat = jnp.concatenate(outs, axis=1)                         # (B, K*C, N, T)
    return jnp.einsum('oc,bcnt->bont', weight, cat) + bias[None, :, None, None]


if __name__ == "__main__":
    B, C, N, T = 4, 8, 16, 8
    K = 2  # diffusion_step

    key = jax.random.PRNGKey(0)
    kx, ka, kab, kw, kb = jax.random.split(key, 5)

    x = jax.random.normal(kx, (B, C, N, T), dtype=jnp.float32)
    adj = jax.nn.softmax(jax.random.normal(ka, (N, N), dtype=jnp.float32), axis=-1)
    adj_b = jax.nn.softmax(jax.random.normal(kab, (B, N, N), dtype=jnp.float32), axis=-1)

    # Conv2d(K*C, C, (1, 1)) parameters, deterministic init.
    weight = (jax.random.normal(kw, (C, K * C), dtype=jnp.float32)
              / jnp.sqrt(jnp.float32(K * C)))
    bias = jax.random.normal(kb, (C,), dtype=jnp.float32) * 0.01

    ref = diffusion_gcn_ref(x, adj, weight, bias, diffusion_step=K)
    ref_b = diffusion_gcn_ref(x, adj_b, weight, bias, diffusion_step=K)

    # 1) shared adj, f32 MXU path, default tile chooser: bit-level algorithm check.
    out = jax.block_until_ready(
        diffusion_gcn(x, adj, weight, bias, diffusion_step=K,
                      compute_dtype=jnp.float32))
    assert out.shape == (B, C, N, T) and out.dtype == x.dtype
    assert jnp.allclose(out, ref, atol=1e-4, rtol=1e-4), (
        f"shared/f32: max abs err = {jnp.max(jnp.abs(out - ref))}")

    # 2) shared adj, default bf16 MXU operands (f32 accumulation), Bt > 1 path.
    out = jax.block_until_ready(
        diffusion_gcn(x, adj, weight, bias, diffusion_step=K, batch_tile=2))
    assert jnp.allclose(out, ref, atol=3e-2, rtol=3e-2), (
        f"shared/bf16: max abs err = {jnp.max(jnp.abs(out - ref))}")

    # 3) per-batch (3-D) adj branch, f32 MXU path, Bt > 1: tight check.
    out = jax.block_until_ready(
        diffusion_gcn(x, adj_b, weight, bias, diffusion_step=K,
                      compute_dtype=jnp.float32, batch_tile=2))
    assert jnp.allclose(out, ref_b, atol=1e-4, rtol=1e-4), (
        f"per-batch/f32: max abs err = {jnp.max(jnp.abs(out - ref_b))}")

    # 4) bf16 output (halves output HBM traffic for bf16 consumers).
    out = jax.block_until_ready(
        diffusion_gcn(x, adj, weight, bias, diffusion_step=K,
                      out_dtype=jnp.bfloat16))
    assert out.dtype == jnp.bfloat16
    assert jnp.allclose(out.astype(jnp.float32), ref, atol=4e-2, rtol=4e-2), (
        f"shared/bf16-out: max abs err = "
        f"{jnp.max(jnp.abs(out.astype(jnp.float32) - ref))}")

    print("KERNEL_OK")
</pallas_src>

<mosaic_0001>
module attributes {stable_mosaic.version = 11 : i64} {
  func.func @_diffusion_gcn_kernel(%arg0: i32, %arg1: memref<1x8x16x8xf32, #tpu.memory_space<vmem>>, %arg2: memref<1x16x16xf32, #tpu.memory_space<vmem>>, %arg3: memref<2x8x8xf32, #tpu.memory_space<vmem>>, %arg4: memref<8x1xf32, #tpu.memory_space<vmem>>, %arg5: memref<1x8x16x8xf32, #tpu.memory_space<vmem>>) attributes {dimension_semantics = [#tpu.dimension_semantics<parallel>], iteration_bounds = array<i64: 4>, scalar_prefetch = 0 : i64, scratch_operands = 0 : i64, tpu.core_type = #tpu.core_type<tc>, window_params = [{transform_indices = @transform_0, window_bounds = array<i64: 1, 8, 16, 8>}, {pipeline_mode = #tpu.pipeline_mode<synchronous>, transform_indices = @transform_1, window_bounds = array<i64: 1, 16, 16>}, {pipeline_mode = #tpu.pipeline_mode<synchronous>, transform_indices = @transform_2, window_bounds = array<i64: 2, 8, 8>}, {pipeline_mode = #tpu.pipeline_mode<synchronous>, transform_indices = @transform_3, window_bounds = array<i64: 8, 1>}, {transform_indices = @transform_4, window_bounds = array<i64: 1, 8, 16, 8>}]} {
    %c0 = arith.constant 0 : index
    %c0_0 = arith.constant 0 : index
    %c0_1 = arith.constant 0 : index
    %c0_2 = arith.constant 0 : index
    %0 = vector.load %arg1[%c0, %c0_0, %c0_1, %c0_2] : memref<1x8x16x8xf32, #tpu.memory_space<vmem>>, vector<1x8x16x8xf32>
    %1 = tpu.transpose %0, [0, 1, 3, 2] : vector<1x8x16x8xf32> -> vector<1x8x8x16xf32>
    %c0_3 = arith.constant 0 : index
    %c0_4 = arith.constant 0 : index
    %c0_5 = arith.constant 0 : index
    %2 = vector.load %arg3[%c0_3, %c0_4, %c0_5] : memref<2x8x8xf32, #tpu.memory_space<vmem>>, vector<2x8x8xf32>
    %c0_6 = arith.constant 0 : index
    %c0_7 = arith.constant 0 : index
    %3 = vector.load %arg4[%c0_6, %c0_7] : memref<8x1xf32, #tpu.memory_space<vmem>>, vector<8x1xf32>
    %4 = vector.shape_cast %3 : vector<8x1xf32> to vector<8x1x1xf32>
    %c0_8 = arith.constant 0 : index
    %c0_9 = arith.constant 0 : index
    %c0_10 = arith.constant 0 : index
    %5 = vector.load %arg2[%c0_8, %c0_9, %c0_10] : memref<1x16x16xf32, #tpu.memory_space<vmem>>, vector<1x16x16xf32>
    %6 = vector.shape_cast %5 : vector<1x16x16xf32> to vector<16x16xf32>
    %7 = vector.shape_cast %1 : vector<1x8x8x16xf32> to vector<8x8x16xf32>
    %cst = arith.constant dense<0.000000e+00> : vector<8x8x16xf32>
    %8 = tpu.matmul %7, %6, %cst {dimension_numbers = #tpu.dot_dimension_numbers<[2], [0], [0, 1], [1], [0, 0, 0, 1, 1, 1], [], []>} : vector<8x8x16xf32>, vector<16x16xf32>, vector<8x8x16xf32> -> vector<8x8x16xf32>
    %cst_11 = arith.constant dense<0.000000e+00> : vector<8x8x16xf32>
    %9 = tpu.matmul %8, %6, %cst_11 {dimension_numbers = #tpu.dot_dimension_numbers<[2], [0], [0, 1], [1], [0, 0, 0, 1, 1, 1], [], []>} : vector<8x8x16xf32>, vector<16x16xf32>, vector<8x8x16xf32> -> vector<8x8x16xf32>
    %cst_12 = arith.constant 0.000000e+00 : f32
    %10 = vector.broadcast %cst_12 : f32 to vector<8x8x16xf32>
    %11 = vector.extract_strided_slice %2 {offsets = [0, 0, 0], sizes = [1, 8, 8], strides = [1, 1, 1]} : vector<2x8x8xf32> to vector<1x8x8xf32>
    %12 = vector.shape_cast %11 : vector<1x8x8xf32> to vector<8x8xf32>
    %cst_13 = arith.constant dense<0.000000e+00> : vector<8x8x16xf32>
    %13 = tpu.matmul %12, %8, %cst_13 {dimension_numbers = #tpu.dot_dimension_numbers<[1], [0], [0], [1, 2], [0, 0, 1, 1, 1, 2], [], []>} : vector<8x8xf32>, vector<8x8x16xf32>, vector<8x8x16xf32> -> vector<8x8x16xf32>
    %14 = arith.addf %10, %13 : vector<8x8x16xf32>
    %15 = vector.extract_strided_slice %2 {offsets = [1, 0, 0], sizes = [1, 8, 8], strides = [1, 1, 1]} : vector<2x8x8xf32> to vector<1x8x8xf32>
    %16 = vector.shape_cast %15 : vector<1x8x8xf32> to vector<8x8xf32>
    %cst_14 = arith.constant dense<0.000000e+00> : vector<8x8x16xf32>
    %17 = tpu.matmul %16, %9, %cst_14 {dimension_numbers = #tpu.dot_dimension_numbers<[1], [0], [0], [1, 2], [0, 0, 1, 1, 1, 2], [], []>} : vector<8x8xf32>, vector<8x8x16xf32>, vector<8x8x16xf32> -> vector<8x8x16xf32>
    %18 = arith.addf %14, %17 : vector<8x8x16xf32>
    %19 = vector.broadcast %4 : vector<8x1x1xf32> to vector<8x8x16xf32>
    %20 = arith.addf %18, %19 : vector<8x8x16xf32>
    %21 = tpu.transpose %20, [0, 2, 1] : vector<8x8x16xf32> -> vector<8x16x8xf32>
    %c0_15 = arith.constant 0 : index
    %c0_16 = arith.constant 0 : index
    %c0_17 = arith.constant 0 : index
    %c0_18 = arith.constant 0 : index
    %22 = vector.load %arg5[%c0_15, %c0_16, %c0_17, %c0_18] : memref<1x8x16x8xf32, #tpu.memory_space<vmem>>, vector<1x8x16x8xf32>
    %23 = vector.shape_cast %22 : vector<1x8x16x8xf32> to vector<8x16x8xf32>
    %24 = vector.shape_cast %21 : vector<8x16x8xf32> to vector<1x8x16x8xf32>
    tpu.vector_store %arg5[%c0_15, %c0_16, %c0_17, %c0_18], %24 {strides = array<i32>} : memref<1x8x16x8xf32, #tpu.memory_space<vmem>>, vector<1x8x16x8xf32>,
    return
  }
  func.func @transform_0(%arg0: i32) -> (i32, i32, i32, i32) {
    %c0_i32 = arith.constant 0 : i32
    %c0_i32_0 = arith.constant 0 : i32
    %c0_i32_1 = arith.constant 0 : i32
    %c0_i32_2 = arith.constant 0 : i32
    return %arg0, %c0_i32, %c0_i32_0, %c0_i32_1 : i32, i32, i32, i32
  }
  func.func @transform_1(%arg0: i32) -> (i32, i32, i32) {
    %c0_i32 = arith.constant 0 : i32
    %c0_i32_0 = arith.constant 0 : i32
    %c0_i32_1 = arith.constant 0 : i32
    %c0_i32_2 = arith.constant 0 : i32
    return %c0_i32, %c0_i32_0, %c0_i32_1 : i32, i32, i32
  }
  func.func @transform_2(%arg0: i32) -> (i32, i32, i32) {
    %c0_i32 = arith.constant 0 : i32
    %c0_i32_0 = arith.constant 0 : i32
    %c0_i32_1 = arith.constant 0 : i32
    %c0_i32_2 = arith.constant 0 : i32
    return %c0_i32, %c0_i32_0, %c0_i32_1 : i32, i32, i32
  }
  func.func @transform_3(%arg0: i32) -> (i32, i32) {
    %c0_i32 = arith.constant 0 : i32
    %c0_i32_0 = arith.constant 0 : i32
    %c0_i32_1 = arith.constant 0 : i32
    return %c0_i32, %c0_i32_0 : i32, i32
  }
  func.func @transform_4(%arg0: i32) -> (i32, i32, i32, i32) {
    %c0_i32 = arith.constant 0 : i32
    %c0_i32_0 = arith.constant 0 : i32
    %c0_i32_1 = arith.constant 0 : i32
    %c0_i32_2 = arith.constant 0 : i32
    return %arg0, %c0_i32, %c0_i32_0, %c0_i32_1 : i32, i32, i32, i32
  }
}

</mosaic_0001>

<llo_original>
// kernel: tpu_custom_call.1
$region0: #{tpu_custom_call.1}
  #allocation0 [shape = 'u32[]', space=smem, size = 0x4, offset = 0x4, fixed_abs, tag = 'smem constant byte address 0x4 - core index']
  #allocation1 [shape = 'u32[144,128]{1,0:T(1,128)}', space=vmem, size = 0x12000, scoped, tag = 'internal scratch']
  %s0 = inlined_call_operand.vmem [shape: f32[4,8,16,8], index: 0, kind: input, shape index: {}]
  %s1 = inlined_call_operand.vmem [shape: f32[1,16,16], index: 1, kind: input, shape index: {}]
  %s2 = inlined_call_operand.vmem [shape: f32[2,8,8], index: 2, kind: input, shape index: {}]
  %s3 = inlined_call_operand.vmem [shape: f32[8,1], index: 3, kind: input, shape index: {}]
  %s4 = inlined_call_operand.vmem [shape: f32[4,8,16,8], index: 4, kind: output, shape index: {}]
  %s5 = sld [smem:[#allocation0]]
  $region49: #{tpu_custom_call.1} parent=0
    _
  %s7 = ssub.s32 1, %s5
  %s8 = scalar_select 0, %s7, %s5
  loop: start=0, step=1, limit=6
  $region2: #{tpu_custom_call.1} parent=0 // loop_pre_header
    _
  $region3: #{tpu_custom_call.1} parent=0 // loop_header
    %s10 = sphi 0, %s14
    %p11 = scmp.ge.s32.totalorder %s10, 6
    %s20 = sphi 0, %s22
    %s23 = sphi 0, %s20
    %s24 = sphi 0, %s23
    %s40 = sphi 0, %s24
    %s44 = sphi 0, %s44
    %s46 = sphi 0, %s44
    %s47 = sphi 0, %s46
    %s61 = sphi 0, %s47
    %s65 = sphi 0, %s65
    %s67 = sphi 0, %s65
    %s68 = sphi 0, %s67
    %s82 = sphi 0, %s68
    %s86 = sphi 0, %s86
    %s88 = sphi 0, %s86
    %s89 = sphi 0, %s88
    %s103 = sphi 0, %s89
    %s109 = sphi 0, %s111
    %s112 = sphi 0, %s109
    %s113 = sphi 0, %s112
    %s129 = sphi 0, %s113
  $region4: #{tpu_custom_call.1} parent=0 // loop_header_branch
    %13 = sbr.rel (%p11) target = $region8
  $region5: #{tpu_custom_call.1} parent=0 // loop_body
    %s15 = ssub.s32 %s10, 1
    %s16 = ssub.s32 %s10, 2
    %s17 = sadd.s32 %s10, 1
    %s18 = ssub.s32 %s10, %s17
    %p19 = scmp.eq.s32.totalorder %s18, 0
    %s21 = sadd.s32 %s20, 1
    %s22 = scalar_select %p19, %s20, %s21
    %p25 = pneg %p19
    %p26 = scmp.eq.s32.totalorder %s10, 3
    %p27 = por %p25, %p26
    %p28 = scmp.ne.s32.totalorder %s20, %s23
    %p29 = scmp.eq.s32.totalorder %s10, 0
    %p30 = por %p28, %p29
    %p31 = scmp.ne.s32.totalorder %s20, %s23
    %p32 = scmp.eq.s32.totalorder %s15, 3
    %p33 = por %p31, %p32
    %p34 = scmp.ne.s32.totalorder %s23, %s24
    %p35 = scmp.eq.s32.totalorder %s15, 0
    %p36 = por %p34, %p35
    %p37 = scmp.ne.s32.totalorder %s23, %s24
    %p38 = scmp.eq.s32.totalorder %s16, 3
    %p39 = por %p37, %p38
    %p41 = scmp.ne.s32.totalorder %s24, %s40
    %p42 = scmp.eq.s32.totalorder %s16, 0
    %p43 = por %p41, %p42
    %s45 = sadd.s32 %s44, 1
    %p48 = scmp.eq.s32.totalorder %s10, 3
    %p49 = scmp.ne.s32.totalorder %s44, %s46
    %p50 = scmp.eq.s32.totalorder %s10, 0
    %p51 = por %p49, %p50
    %p52 = scmp.ne.s32.totalorder %s44, %s46
    %p53 = scmp.eq.s32.totalorder %s15, 3
    %p54 = por %p52, %p53
    %p55 = scmp.ne.s32.totalorder %s46, %s47
    %p56 = scmp.eq.s32.totalorder %s15, 0
    %p57 = por %p55, %p56
    %p58 = scmp.ne.s32.totalorder %s46, %s47
    %p59 = scmp.eq.s32.totalorder %s16, 3
    %p60 = por %p58, %p59
    %p62 = scmp.ne.s32.totalorder %s47, %s61
    %p63 = scmp.eq.s32.totalorder %s16, 0
    %p64 = por %p62, %p63
    %s66 = sadd.s32 %s65, 1
    %p69 = scmp.eq.s32.totalorder %s10, 3
    %p70 = scmp.ne.s32.totalorder %s65, %s67
    %p71 = scmp.eq.s32.totalorder %s10, 0
    %p72 = por %p70, %p71
    %p73 = scmp.ne.s32.totalorder %s65, %s67
    %p74 = scmp.eq.s32.totalorder %s15, 3
    %p75 = por %p73, %p74
    %p76 = scmp.ne.s32.totalorder %s67, %s68
    %p77 = scmp.eq.s32.totalorder %s15, 0
    %p78 = por %p76, %p77
    %p79 = scmp.ne.s32.totalorder %s67, %s68
    %p80 = scmp.eq.s32.totalorder %s16, 3
    %p81 = por %p79, %p80
    %p83 = scmp.ne.s32.totalorder %s68, %s82
    %p84 = scmp.eq.s32.totalorder %s16, 0
    %p85 = por %p83, %p84
    %s87 = sadd.s32 %s86, 1
    %p90 = scmp.eq.s32.totalorder %s10, 3
    %p91 = scmp.ne.s32.totalorder %s86, %s88
    %p92 = scmp.eq.s32.totalorder %s10, 0
    %p93 = por %p91, %p92
    %p94 = scmp.ne.s32.totalorder %s86, %s88
    %p95 = scmp.eq.s32.totalorder %s15, 3
    %p96 = por %p94, %p95
    %p97 = scmp.ne.s32.totalorder %s88, %s89
    %p98 = scmp.eq.s32.totalorder %s15, 0
    %p99 = por %p97, %p98
    %p100 = scmp.ne.s32.totalorder %s88, %s89
    %p101 = scmp.eq.s32.totalorder %s16, 3
    %p102 = por %p100, %p101
    %p104 = scmp.ne.s32.totalorder %s89, %s103
    %p105 = scmp.eq.s32.totalorder %s16, 0
    %p106 = por %p104, %p105
    %s107 = ssub.s32 %s10, %s17
    %p108 = scmp.eq.s32.totalorder %s107, 0
    %s110 = sadd.s32 %s109, 1
    %s111 = scalar_select %p108, %s109, %s110
    %p114 = pneg %p108
    %p115 = scmp.eq.s32.totalorder %s10, 3
    %p116 = por %p114, %p115
    %p117 = scmp.ne.s32.totalorder %s109, %s112
    %p118 = scmp.eq.s32.totalorder %s10, 0
    %p119 = por %p117, %p118
    %p120 = scmp.ne.s32.totalorder %s109, %s112
    %p121 = scmp.eq.s32.totalorder %s15, 3
    %p122 = por %p120, %p121
    %p123 = scmp.ne.s32.totalorder %s112, %s113
    %p124 = scmp.eq.s32.totalorder %s15, 0
    %p125 = por %p123, %p124
    %p126 = scmp.ne.s32.totalorder %s112, %s113
    %p127 = scmp.eq.s32.totalorder %s16, 3
    %p128 = por %p126, %p127
    %p130 = scmp.ne.s32.totalorder %s113, %s129
    %p131 = scmp.eq.s32.totalorder %s16, 0
    %p132 = por %p130, %p131
    %p133 = scmp.le.s32.totalorder 1, %s10
    %p134 = scmp.lt.s32.totalorder %s10, 5
    %p135 = pnand %p133, %p134
    %p136 = pneg %p135
    // Predicated region
    $region9: #{tpu_custom_call.1} parent=5 // pred_check
      _
    $region10: #{tpu_custom_call.1} parent=5 // pred_check_branch
      %138 = sbr.rel (%p135) target = $region12
    $region11: #{tpu_custom_call.1} parent=5 // pred_region
      %s139 = ssub.s32 %s10, 1
      // Predicated region
      $region13: #{tpu_custom_call.1} parent=11 // pred_check
        %p140 = pneg %p57
      $region14: #{tpu_custom_call.1} parent=11 // pred_check_branch
        %142 = sbr.rel (%p140) target = $region16
      $region15: #{tpu_custom_call.1} parent=11 // pred_region
        _
      $region16: #{tpu_custom_call.1} parent=11 // pred_fallthru
        _
      // Predicated region
      $region17: #{tpu_custom_call.1} parent=11 // pred_check
        %p143 = pneg %p78
      $region18: #{tpu_custom_call.1} parent=11 // pred_check_branch
        %145 = sbr.rel (%p143) target = $region20
      $region19: #{tpu_custom_call.1} parent=11 // pred_region
        _
      $region20: #{tpu_custom_call.1} parent=11 // pred_fallthru
        _
      // Predicated region
      $region21: #{tpu_custom_call.1} parent=11 // pred_check
        %p146 = pneg %p99
      $region22: #{tpu_custom_call.1} parent=11 // pred_check_branch
        %148 = sbr.rel (%p146) target = $region24
      $region23: #{tpu_custom_call.1} parent=11 // pred_region
        _
      $region24: #{tpu_custom_call.1} parent=11 // pred_fallthru
        _
    $region12: #{tpu_custom_call.1} parent=5 // pred_fallthru
      _
    %p149 = scmp.lt.s32.totalorder %s10, 4
    // Predicated region
    $region25: #{tpu_custom_call.1} parent=5 // pred_check
      %p150 = pneg %p149
    $region26: #{tpu_custom_call.1} parent=5 // pred_check_branch
      %152 = sbr.rel (%p150) target = $region28
    $region27: #{tpu_custom_call.1} parent=5 // pred_region
      // Predicated region
      $region29: #{tpu_custom_call.1} parent=27 // pred_check
        %p153 = pneg %p30
      $region30: #{tpu_custom_call.1} parent=27 // pred_check_branch
        %155 = sbr.rel (%p153) target = $region32
      $region31: #{tpu_custom_call.1} parent=27 // pred_region
        %p156 = scmp.lt.s32.totalorder %s10, 3
        %s157 = scalar_select %p156, %s10, 3
        %s158 = smul.addr %s157, 16
        %s159 = smul.addr %s158, 8
        %s160 = scalar_lea.vmem %s0, %s159
      $region32: #{tpu_custom_call.1} parent=27 // pred_fallthru
        _
    $region28: #{tpu_custom_call.1} parent=5 // pred_fallthru
      _
    %p161 = scmp.le.s32.totalorder 1, %s10
    %p162 = scmp.lt.s32.totalorder %s10, 5
    %p163 = pnand %p161, %p162
    %p164 = pneg %p163
    // Predicated region
    $region33: #{tpu_custom_call.1} parent=5 // pred_check
      _
    $region34: #{tpu_custom_call.1} parent=5 // pred_check_branch
      %166 = sbr.rel (%p163) target = $region36
    $region35: #{tpu_custom_call.1} parent=5 // pred_region
      %s167 = ssub.s32 %s10, 1
      %p168 = scmp.lt.s32.totalorder %s15, 3
      %s169 = scalar_select %p168, %s15, 3
      %s170 = smul.addr %s169, 16
      %s171 = smul.addr %s170, 8
      %s172 = scalar_lea.vmem %s0, %s171
      %p173 = pneg %p36
      %p174 = pneg %p33
      %p175 = pneg %p57
      %p176 = pneg %p54
      %p177 = pneg %p78
      %p178 = pneg %p75
      %p179 = pneg %p99
      %p180 = pneg %p96
      %p181 = pneg %p125
      %p182 = pneg %p122
      %p183 = scmp.lt.s32.totalorder %s15, 3
      %s184 = scalar_select %p183, %s15, 3
      %s185 = smul.addr %s184, 16
      %s186 = smul.addr %s185, 8
      %s187 = scalar_lea.vmem %s4, %s186
      %p188 = scmp.lt.s32.totalorder %s15, 3
      %s189 = scalar_select %p188, %s15, 3
      %s190 = smul.addr %s189, 16
      %s191 = smul.addr %s190, 8
      %s192 = scalar_lea.vmem %s0, %s191
      %p193 = scmp.lt.s32.totalorder %s15, 3
      %s194 = scalar_select %p193, %s15, 3
      %s195 = smul.addr %s194, 16
      %s196 = smul.addr %s195, 8
      %s197 = scalar_lea.vmem %s4, %s196
      %v198 = vld [vmem:[%s192] sm:$0xff]
      %v199 = vld [vmem:[%s192 + $0x8] sm:$0xff]
      %v200 = vld [vmem:[%s192 + $0x10] sm:$0xff]
      %v201 = vld [vmem:[%s192 + $0x18] sm:$0xff]
      %v202 = vld [vmem:[%s192 + $0x20] sm:$0xff]
      %v203 = vld [vmem:[%s192 + $0x28] sm:$0xff]
      %v204 = vld [vmem:[%s192 + $0x30] sm:$0xff]
      %v205 = vld [vmem:[%s192 + $0x38] sm:$0xff]
      %v206 = vld [vmem:[%s192 + $0x40] sm:$0xff]
      %v207 = vld [vmem:[%s192 + $0x48] sm:$0xff]
      %v208 = vld [vmem:[%s192 + $0x50] sm:$0xff]
      %v209 = vld [vmem:[%s192 + $0x58] sm:$0xff]
      %v210 = vld [vmem:[%s192 + $0x60] sm:$0xff]
      %v211 = vld [vmem:[%s192 + $0x68] sm:$0xff]
      %v212 = vld [vmem:[%s192 + $0x70] sm:$0xff]
      %v213 = vld [vmem:[%s192 + $0x78] sm:$0xff]
      %214 = vxpose.xlu0.b32.start [1/16] %v198, 128
      %215 = vxpose.xlu0.b32.cont [2/16] %v199, 128
      %216 = vxpose.xlu0.b32.cont [3/16] 0.0, 128
      %217 = vxpose.xlu0.b32.cont [4/16] 0.0, 128
      %218 = vxpose.xlu0.b32.cont [5/16] 0.0, 128
      %219 = vxpose.xlu0.b32.cont [6/16] 0.0, 128
      %220 = vxpose.xlu0.b32.cont [7/16] 0.0, 128
      %221 = vxpose.xlu0.b32.cont [8/16] 0.0, 128
      %222 = vxpose.xlu0.b32.cont [9/16] 0.0, 128
      %223 = vxpose.xlu0.b32.cont [10/16] 0.0, 128
      %224 = vxpose.xlu0.b32.cont [11/16] 0.0, 128
      %225 = vxpose.xlu0.b32.cont [12/16] 0.0, 128
      %226 = vxpose.xlu0.b32.cont [13/16] 0.0, 128
      %227 = vxpose.xlu0.b32.cont [14/16] 0.0, 128
      %228 = vxpose.xlu0.b32.cont [15/16] 0.0, 128
      %229 = vxpose.xlu0.b32.end [16/16] 0.0, 128
      %v230 = vpop.trf.xlu0
      %v231 = vpop.trf.xlu0
      %v232 = vpop.trf.xlu0
      %v233 = vpop.trf.xlu0
      %v234 = vpop.trf.xlu0
      %v235 = vpop.trf.xlu0
      %v236 = vpop.trf.xlu0
      %v237 = vpop.trf.xlu0
      %v238 = vpop.trf.xlu0
      %v239 = vpop.trf.xlu0
      %v240 = vpop.trf.xlu0
      %v241 = vpop.trf.xlu0
      %v242 = vpop.trf.xlu0
      %v243 = vpop.trf.xlu0
      %v244 = vpop.trf.xlu0
      %v245 = vpop.trf.xlu0
      %246 = vxpose.xlu0.b32.start [1/16] %v200, 128
      %247 = vxpose.xlu0.b32.cont [2/16] %v201, 128
      %248 = vxpose.xlu0.b32.cont [3/16] 0.0, 128
      %249 = vxpose.xlu0.b32.cont [4/16] 0.0, 128
      %250 = vxpose.xlu0.b32.cont [5/16] 0.0, 128
      %251 = vxpose.xlu0.b32.cont [6/16] 0.0, 128
      %252 = vxpose.xlu0.b32.cont [7/16] 0.0, 128
      %253 = vxpose.xlu0.b32.cont [8/16] 0.0, 128
      %254 = vxpose.xlu0.b32.cont [9/16] 0.0, 128
      %255 = vxpose.xlu0.b32.cont [10/16] 0.0, 128
      %256 = vxpose.xlu0.b32.cont [11/16] 0.0, 128
      %257 = vxpose.xlu0.b32.cont [12/16] 0.0, 128
      %258 = vxpose.xlu0.b32.cont [13/16] 0.0, 128
      %259 = vxpose.xlu0.b32.cont [14/16] 0.0, 128
      %260 = vxpose.xlu0.b32.cont [15/16] 0.0, 128
      %261 = vxpose.xlu0.b32.end [16/16] 0.0, 128
      %v262 = vpop.trf.xlu0
      %v263 = vpop.trf.xlu0
      %v264 = vpop.trf.xlu0
      %v265 = vpop.trf.xlu0
      %v266 = vpop.trf.xlu0
      %v267 = vpop.trf.xlu0
      %v268 = vpop.trf.xlu0
      %v269 = vpop.trf.xlu0
      %v270 = vpop.trf.xlu0
      %v271 = vpop.trf.xlu0
      %v272 = vpop.trf.xlu0
      %v273 = vpop.trf.xlu0
      %v274 = vpop.trf.xlu0
      %v275 = vpop.trf.xlu0
      %v276 = vpop.trf.xlu0
      %v277 = vpop.trf.xlu0
      %278 = vxpose.xlu0.b32.start [1/16] %v202, 128
      %279 = vxpose.xlu0.b32.cont [2/16] %v203, 128
      %280 = vxpose.xlu0.b32.cont [3/16] 0.0, 128
      %281 = vxpose.xlu0.b32.cont [4/16] 0.0, 128
      %282 = vxpose.xlu0.b32.cont [5/16] 0.0, 128
      %283 = vxpose.xlu0.b32.cont [6/16] 0.0, 128
      %284 = vxpose.xlu0.b32.cont [7/16] 0.0, 128
      %285 = vxpose.xlu0.b32.cont [8/16] 0.0, 128
      %286 = vxpose.xlu0.b32.cont [9/16] 0.0, 128
      %287 = vxpose.xlu0.b32.cont [10/16] 0.0, 128
      %288 = vxpose.xlu0.b32.cont [11/16] 0.0, 128
      %289 = vxpose.xlu0.b32.cont [12/16] 0.0, 128
      %290 = vxpose.xlu0.b32.cont [13/16] 0.0, 128
      %291 = vxpose.xlu0.b32.cont [14/16] 0.0, 128
      %292 = vxpose.xlu0.b32.cont [15/16] 0.0, 128
      %293 = vxpose.xlu0.b32.end [16/16] 0.0, 128
      %v294 = vpop.trf.xlu0
      %v295 = vpop.trf.xlu0
      %v296 = vpop.trf.xlu0
      %v297 = vpop.trf.xlu0
      %v298 = vpop.trf.xlu0
      %v299 = vpop.trf.xlu0
      %v300 = vpop.trf.xlu0
      %v301 = vpop.trf.xlu0
      %v302 = vpop.trf.xlu0
      %v303 = vpop.trf.xlu0
      %v304 = vpop.trf.xlu0
      %v305 = vpop.trf.xlu0
      %v306 = vpop.trf.xlu0
      %v307 = vpop.trf.xlu0
      %v308 = vpop.trf.xlu0
      %v309 = vpop.trf.xlu0
      %310 = vxpose.xlu0.b32.start [1/16] %v204, 128
      %311 = vxpose.xlu0.b32.cont [2/16] %v205, 128
      %312 = vxpose.xlu0.b32.cont [3/16] 0.0, 128
      %313 = vxpose.xlu0.b32.cont [4/16] 0.0, 128
      %314 = vxpose.xlu0.b32.cont [5/16] 0.0, 128
      %315 = vxpose.xlu0.b32.cont [6/16] 0.0, 128
      %316 = vxpose.xlu0.b32.cont [7/16] 0.0, 128
      %317 = vxpose.xlu0.b32.cont [8/16] 0.0, 128
      %318 = vxpose.xlu0.b32.cont [9/16] 0.0, 128
      %319 = vxpose.xlu0.b32.cont [10/16] 0.0, 128
      %320 = vxpose.xlu0.b32.cont [11/16] 0.0, 128
      %321 = vxpose.xlu0.b32.cont [12/16] 0.0, 128
      %322 = vxpose.xlu0.b32.cont [13/16] 0.0, 128
      %323 = vxpose.xlu0.b32.cont [14/16] 0.0, 128
      %324 = vxpose.xlu0.b32.cont [15/16] 0.0, 128
      %325 = vxpose.xlu0.b32.end [16/16] 0.0, 128
      %v326 = vpop.trf.xlu0
      %v327 = vpop.trf.xlu0
      %v328 = vpop.trf.xlu0
      %v329 = vpop.trf.xlu0
      %v330 = vpop.trf.xlu0
      %v331 = vpop.trf.xlu0
      %v332 = vpop.trf.xlu0
      %v333 = vpop.trf.xlu0
      %v334 = vpop.trf.xlu0
      %v335 = vpop.trf.xlu0
      %v336 = vpop.trf.xlu0
      %v337 = vpop.trf.xlu0
      %v338 = vpop.trf.xlu0
      %v339 = vpop.trf.xlu0
      %v340 = vpop.trf.xlu0
      %v341 = vpop.trf.xlu0
      %342 = vxpose.xlu0.b32.start [1/16] %v206, 128
      %343 = vxpose.xlu0.b32.cont [2/16] %v207, 128
      %344 = vxpose.xlu0.b32.cont [3/16] 0.0, 128
      %345 = vxpose.xlu0.b32.cont [4/16] 0.0, 128
      %346 = vxpose.xlu0.b32.cont [5/16] 0.0, 128
      %347 = vxpose.xlu0.b32.cont [6/16] 0.0, 128
      %348 = vxpose.xlu0.b32.cont [7/16] 0.0, 128
      %349 = vxpose.xlu0.b32.cont [8/16] 0.0, 128
      %350 = vxpose.xlu0.b32.cont [9/16] 0.0, 128
      %351 = vxpose.xlu0.b32.cont [10/16] 0.0, 128
      %352 = vxpose.xlu0.b32.cont [11/16] 0.0, 128
      %353 = vxpose.xlu0.b32.cont [12/16] 0.0, 128
      %354 = vxpose.xlu0.b32.cont [13/16] 0.0, 128
      %355 = vxpose.xlu0.b32.cont [14/16] 0.0, 128
      %356 = vxpose.xlu0.b32.cont [15/16] 0.0, 128
      %357 = vxpose.xlu0.b32.end [16/16] 0.0, 128
      %v358 = vpop.trf.xlu0
      %v359 = vpop.trf.xlu0
      %v360 = vpop.trf.xlu0
      %v361 = vpop.trf.xlu0
      %v362 = vpop.trf.xlu0
      %v363 = vpop.trf.xlu0
      %v364 = vpop.trf.xlu0
      %v365 = vpop.trf.xlu0
      %v366 = vpop.trf.xlu0
      %v367 = vpop.trf.xlu0
      %v368 = vpop.trf.xlu0
      %v369 = vpop.trf.xlu0
      %v370 = vpop.trf.xlu0
      %v371 = vpop.trf.xlu0
      %v372 = vpop.trf.xlu0
      %v373 = vpop.trf.xlu0
      %374 = vxpose.xlu0.b32.start [1/16] %v208, 128
      %375 = vxpose.xlu0.b32.cont [2/16] %v209, 128
      %376 = vxpose.xlu0.b32.cont [3/16] 0.0, 128
      %377 = vxpose.xlu0.b32.cont [4/16] 0.0, 128
      %378 = vxpose.xlu0.b32.cont [5/16] 0.0, 128
      %379 = vxpose.xlu0.b32.cont [6/16] 0.0, 128
      %380 = vxpose.xlu0.b32.cont [7/16] 0.0, 128
      %381 = vxpose.xlu0.b32.cont [8/16] 0.0, 128
      %382 = vxpose.xlu0.b32.cont [9/16] 0.0, 128
      %383 = vxpose.xlu0.b32.cont [10/16] 0.0, 128
      %384 = vxpose.xlu0.b32.cont [11/16] 0.0, 128
      %385 = vxpose.xlu0.b32.cont [12/16] 0.0, 128
      %386 = vxpose.xlu0.b32.cont [13/16] 0.0, 128
      %387 = vxpose.xlu0.b32.cont [14/16] 0.0, 128
      %388 = vxpose.xlu0.b32.cont [15/16] 0.0, 128
      %389 = vxpose.xlu0.b32.end [16/16] 0.0, 128
      %v390 = vpop.trf.xlu0
      %v391 = vpop.trf.xlu0
      %v392 = vpop.trf.xlu0
      %v393 = vpop.trf.xlu0
      %v394 = vpop.trf.xlu0
      %v395 = vpop.trf.xlu0
      %v396 = vpop.trf.xlu0
      %v397 = vpop.trf.xlu0
      %v398 = vpop.trf.xlu0
      %v399 = vpop.trf.xlu0
      %v400 = vpop.trf.xlu0
      %v401 = vpop.trf.xlu0
      %v402 = vpop.trf.xlu0
      %v403 = vpop.trf.xlu0
      %v404 = vpop.trf.xlu0
      %v405 = vpop.trf.xlu0
      %406 = vxpose.xlu0.b32.start [1/16] %v210, 128
      %407 = vxpose.xlu0.b32.cont [2/16] %v211, 128
      %408 = vxpose.xlu0.b32.cont [3/16] 0.0, 128
      %409 = vxpose.xlu0.b32.cont [4/16] 0.0, 128
      %410 = vxpose.xlu0.b32.cont [5/16] 0.0, 128
      %411 = vxpose.xlu0.b32.cont [6/16] 0.0, 128
      %412 = vxpose.xlu0.b32.cont [7/16] 0.0, 128
      %413 = vxpose.xlu0.b32.cont [8/16] 0.0, 128
      %414 = vxpose.xlu0.b32.cont [9/16] 0.0, 128
      %415 = vxpose.xlu0.b32.cont [10/16] 0.0, 128
      %416 = vxpose.xlu0.b32.cont [11/16] 0.0, 128
      %417 = vxpose.xlu0.b32.cont [12/16] 0.0, 128
      %418 = vxpose.xlu0.b32.cont [13/16] 0.0, 128
      %419 = vxpose.xlu0.b32.cont [14/16] 0.0, 128
      %420 = vxpose.xlu0.b32.cont [15/16] 0.0, 128
      %421 = vxpose.xlu0.b32.end [16/16] 0.0, 128
      %v422 = vpop.trf.xlu0
      %v423 = vpop.trf.xlu0
      %v424 = vpop.trf.xlu0
      %v425 = vpop.trf.xlu0
      %v426 = vpop.trf.xlu0
      %v427 = vpop.trf.xlu0
      %v428 = vpop.trf.xlu0
      %v429 = vpop.trf.xlu0
      %v430 = vpop.trf.xlu0
      %v431 = vpop.trf.xlu0
      %v432 = vpop.trf.xlu0
      %v433 = vpop.trf.xlu0
      %v434 = vpop.trf.xlu0
      %v435 = vpop.trf.xlu0
      %v436 = vpop.trf.xlu0
      %v437 = vpop.trf.xlu0
      %438 = vxpose.xlu0.b32.start [1/16] %v212, 128
      %439 = vxpose.xlu0.b32.cont [2/16] %v213, 128
      %440 = vxpose.xlu0.b32.cont [3/16] 0.0, 128
      %441 = vxpose.xlu0.b32.cont [4/16] 0.0, 128
      %442 = vxpose.xlu0.b32.cont [5/16] 0.0, 128
      %443 = vxpose.xlu0.b32.cont [6/16] 0.0, 128
      %444 = vxpose.xlu0.b32.cont [7/16] 0.0, 128
      %445 = vxpose.xlu0.b32.cont [8/16] 0.0, 128
      %446 = vxpose.xlu0.b32.cont [9/16] 0.0, 128
      %447 = vxpose.xlu0.b32.cont [10/16] 0.0, 128
      %448 = vxpose.xlu0.b32.cont [11/16] 0.0, 128
      %449 = vxpose.xlu0.b32.cont [12/16] 0.0, 128
      %450 = vxpose.xlu0.b32.cont [13/16] 0.0, 128
      %451 = vxpose.xlu0.b32.cont [14/16] 0.0, 128
      %452 = vxpose.xlu0.b32.cont [15/16] 0.0, 128
      %453 = vxpose.xlu0.b32.end [16/16] 0.0, 128
      %v454 = vpop.trf.xlu0
      %v455 = vpop.trf.xlu0
      %v456 = vpop.trf.xlu0
      %v457 = vpop.trf.xlu0
      %v458 = vpop.trf.xlu0
      %v459 = vpop.trf.xlu0
      %v460 = vpop.trf.xlu0
      %v461 = vpop.trf.xlu0
      %v462 = vpop.trf.xlu0
      %v463 = vpop.trf.xlu0
      %v464 = vpop.trf.xlu0
      %v465 = vpop.trf.xlu0
      %v466 = vpop.trf.xlu0
      %v467 = vpop.trf.xlu0
      %v468 = vpop.trf.xlu0
      %v469 = vpop.trf.xlu0
      %v470 = vld [vmem:[%s2] sm:$0xff]
      %v471 = vld [vmem:[%s2 + $0x8] sm:$0xff]
      %v472 = vld [vmem:[%s3] sm:$0xff]
      %v474 = vcombine.high %v472, %v472
      %v476 = vunpack.c.l.s4 1966171168
      %v477 = vunpack.c.0.s8 %v476
      %v478 = vlaneseq
      %v479 = vshrl.u32 %v478, 7
      %v480 = vsub.s32 %v477, %v479
      %v481 = vrot.slane %v472, %v480
      %v483 = vunpack.c.l.s4 1966171168
      %v484 = vunpack.c.0.s8 %v483
      %v485 = vlaneseq
      %v486 = vshrl.u32 %v485, 7
      %v487 = vsub.s32 %v484, %v486
      %v488 = vrot.slane %v474, %v487
      %v489 = vcombine.high %v481, %v481
      %v490 = vcombine.high %v488, %v488
      %v492 = vunpack.c.l.s4 1966171168
      %v493 = vunpack.c.0.s8 %v492
      %v494 = vlaneseq
      %v495 = vshrl.u32 %v494, 7
      %v496 = vsub.s32 %v493, %v495
      %v497 = vrot.slane %v481, %v496
      %v499 = vunpack.c.l.s4 1966171168
      %v500 = vunpack.c.0.s8 %v499
      %v501 = vlaneseq
      %v502 = vshrl.u32 %v501, 7
      %v503 = vsub.s32 %v500, %v502
      %v504 = vrot.slane %v488, %v503
      %v506 = vunpack.c.l.s4 1966171168
      %v507 = vunpack.c.0.s8 %v506
      %v508 = vlaneseq
      %v509 = vshrl.u32 %v508, 7
      %v510 = vsub.s32 %v507, %v509
      %v511 = vrot.slane %v489, %v510
      %v513 = vunpack.c.l.s4 1966171168
      %v514 = vunpack.c.0.s8 %v513
      %v515 = vlaneseq
      %v516 = vshrl.u32 %v515, 7
      %v517 = vsub.s32 %v514, %v516
      %v518 = vrot.slane %v490, %v517
      %v519 = vcombine.high %v497, %v497
      %v520 = vcombine.high %v504, %v504
      %v521 = vcombine.high %v511, %v511
      %v522 = vcombine.high %v518, %v518
      %v523 = vld [vmem:[%s1] sm:$0xff]
      %v524 = vld [vmem:[%s1 + $0x8] sm:$0xff]
      %vm525 = vcmask 130048
      %v527 = vsel %vm525, %v230, 0
      %v530 = vsel %vm525, %v262, 0
      %v533 = vsel %vm525, %v294, 0
      %v536 = vsel %vm525, %v326, 0
      %v539 = vsel %vm525, %v358, 0
      %v542 = vsel %vm525, %v390, 0
      %v545 = vsel %vm525, %v422, 0
      %v548 = vsel %vm525, %v454, 0
      %550 = vmatprep.subr.mxu0 0.0
      %551 = vmatpush1.msra.mxu0 %v523
      %552 = vmatprep.subr.mxu0 0.0
      %553 = vmatpush1.msra.mxu0 %v524
      %554 = vmatprep.subr.mxu0 0.0
      %555 = vmatpush1.msra.mxu0 0.0
      %556 = vmatprep.subr.mxu0 0.0
      %557 = vmatpush1.msra.mxu0 0.0
      %558 = vmatprep.subr.mxu0 0.0
      %559 = vmatpush1.msra.mxu0 0.0
      %560 = vmatprep.subr.mxu0 0.0
      %561 = vmatpush1.msra.mxu0 0.0
      %562 = vmatprep.subr.mxu0 0.0
      %563 = vmatpush1.msra.mxu0 0.0
      %564 = vmatprep.subr.mxu0 0.0
      %565 = vmatpush1.msra.mxu0 0.0
      %566 = vmatprep.subr.mxu0 0.0
      %567 = vmatpush1.msra.mxu0 0.0
      %568 = vmatprep.subr.mxu0 0.0
      %569 = vmatpush1.msra.mxu0 0.0
      %570 = vmatprep.subr.mxu0 0.0
      %571 = vmatpush1.msra.mxu0 0.0
      %572 = vmatprep.subr.mxu0 0.0
      %573 = vmatpush1.msra.mxu0 0.0
      %574 = vmatprep.subr.mxu0 0.0
      %575 = vmatpush1.msra.mxu0 0.0
      %576 = vmatprep.subr.mxu0 0.0
      %577 = vmatpush1.msra.mxu0 0.0
      %578 = vmatprep.subr.mxu0 0.0
      %579 = vmatpush1.msra.mxu0 0.0
      %580 = vmatprep.subr.mxu0 0.0
      %581 = vmatpush1.msra.mxu0 0.0
      %582 = vmatprep.subr.mxu0 0.0
      %583 = vmatpush1.msra.mxu0 0.0
      %584 = vmatprep.subr.mxu0 0.0
      %585 = vmatpush1.msra.mxu0 0.0
      %586 = vmatprep.subr.mxu0 0.0
      %587 = vmatpush1.msra.mxu0 0.0
      %588 = vmatprep.subr.mxu0 0.0
      %589 = vmatpush1.msra.mxu0 0.0
      %590 = vmatprep.subr.mxu0 0.0
      %591 = vmatpush1.msra.mxu0 0.0
      %592 = vmatprep.subr.mxu0 0.0
      %593 = vmatpush1.msra.mxu0 0.0
      %594 = vmatprep.subr.mxu0 0.0
      %595 = vmatpush1.msra.mxu0 0.0
      %596 = vmatprep.subr.mxu0 0.0
      %597 = vmatpush1.msra.mxu0 0.0
      %598 = vmatprep.subr.mxu0 0.0
      %599 = vmatpush1.msra.mxu0 0.0
      %600 = vmatprep.subr.mxu0 0.0
      %601 = vmatpush1.msra.mxu0 0.0
      %602 = vmatprep.subr.mxu0 0.0
      %603 = vmatpush1.msra.mxu0 0.0
      %604 = vmatprep.subr.mxu0 0.0
      %605 = vmatpush1.msra.mxu0 0.0
      %606 = vmatprep.subr.mxu0 0.0
      %607 = vmatpush1.msra.mxu0 0.0
      %608 = vmatprep.subr.mxu0 0.0
      %609 = vmatpush1.msra.mxu0 0.0
      %610 = vmatprep.subr.mxu0 0.0
      %611 = vmatpush1.msra.mxu0 0.0
      %612 = vmatprep.subr.mxu0 0.0
      %613 = vmatpush1.msra.mxu0 0.0
      %614 = vmatprep.mubr.f32.mxu0 0.0
      %615 = vmatmul.mubr.f32.gmra.mrb[0].mxu0 %v527
      %v616 = vpop.f32.mrb[0].mxu0
      %v617 = vadd.f32 0.0, %v616
      %v618 = vpop.f32.mrb[0].mxu0
      %619 = vmatprep.mubr.f32.mxu0 0.0
      %620 = vmatmul.mubr.f32.gmra.mrb[0].mxu0 %v530
      %v621 = vpop.f32.mrb[0].mxu0
      %v622 = vadd.f32 0.0, %v621
      %v623 = vpop.f32.mrb[0].mxu0
      %624 = vmatprep.mubr.f32.mxu0 0.0
      %625 = vmatmul.mubr.f32.gmra.mrb[0].mxu0 %v533
      %v626 = vpop.f32.mrb[0].mxu0
      %v627 = vadd.f32 0.0, %v626
      %v628 = vpop.f32.mrb[0].mxu0
      %629 = vmatprep.mubr.f32.mxu0 0.0
      %630 = vmatmul.mubr.f32.gmra.mrb[0].mxu0 %v536
      %v631 = vpop.f32.mrb[0].mxu0
      %v632 = vadd.f32 0.0, %v631
      %v633 = vpop.f32.mrb[0].mxu0
      %634 = vmatprep.mubr.f32.mxu0 0.0
      %635 = vmatmul.mubr.f32.gmra.mrb[0].mxu0 %v539
      %v636 = vpop.f32.mrb[0].mxu0
      %v637 = vadd.f32 0.0, %v636
      %v638 = vpop.f32.mrb[0].mxu0
      %639 = vmatprep.mubr.f32.mxu0 0.0
      %640 = vmatmul.mubr.f32.gmra.mrb[0].mxu0 %v542
      %v641 = vpop.f32.mrb[0].mxu0
      %v642 = vadd.f32 0.0, %v641
      %v643 = vpop.f32.mrb[0].mxu0
      %644 = vmatprep.mubr.f32.mxu0 0.0
      %645 = vmatmul.mubr.f32.gmra.mrb[0].mxu0 %v545
      %v646 = vpop.f32.mrb[0].mxu0
      %v647 = vadd.f32 0.0, %v646
      %v648 = vpop.f32.mrb[0].mxu0
      %649 = vmatprep.mubr.f32.mxu0 0.0
      %650 = vmatmul.mubr.f32.gmra.mrb[0].mxu0 %v548
      %v651 = vpop.f32.mrb[0].mxu0
      %v652 = vadd.f32 0.0, %v651
      %v653 = vpop.f32.mrb[0].mxu0
      %654 = vdwg.mxu0
      %v656 = vsel %vm525, %v617, 0
      %v659 = vsel %vm525, %v622, 0
      %v662 = vsel %vm525, %v627, 0
      %v665 = vsel %vm525, %v632, 0
      %v668 = vsel %vm525, %v637, 0
      %v671 = vsel %vm525, %v642, 0
      %v674 = vsel %vm525, %v647, 0
      %v677 = vsel %vm525, %v652, 0
      %679 = vmatprep.subr.mxu0 0.0
      %680 = vmatpush1.msra.mxu0 %v523
      %681 = vmatprep.subr.mxu0 0.0
      %682 = vmatpush1.msra.mxu0 %v524
      %683 = vmatprep.subr.mxu0 0.0
      %684 = vmatpush1.msra.mxu0 0.0
      %685 = vmatprep.subr.mxu0 0.0
      %686 = vmatpush1.msra.mxu0 0.0
      %687 = vmatprep.subr.mxu0 0.0
      %688 = vmatpush1.msra.mxu0 0.0
      %689 = vmatprep.subr.mxu0 0.0
      %690 = vmatpush1.msra.mxu0 0.0
      %691 = vmatprep.subr.mxu0 0.0
      %692 = vmatpush1.msra.mxu0 0.0
      %693 = vmatprep.subr.mxu0 0.0
      %694 = vmatpush1.msra.mxu0 0.0
      %695 = vmatprep.subr.mxu0 0.0
      %696 = vmatpush1.msra.mxu0 0.0
      %697 = vmatprep.subr.mxu0 0.0
      %698 = vmatpush1.msra.mxu0 0.0
      %699 = vmatprep.subr.mxu0 0.0
      %700 = vmatpush1.msra.mxu0 0.0
      %701 = vmatprep.subr.mxu0 0.0
      %702 = vmatpush1.msra.mxu0 0.0
      %703 = vmatprep.subr.mxu0 0.0
      %704 = vmatpush1.msra.mxu0 0.0
      %705 = vmatprep.subr.mxu0 0.0
      %706 = vmatpush1.msra.mxu0 0.0
      %707 = vmatprep.subr.mxu0 0.0
      %708 = vmatpush1.msra.mxu0 0.0
      %709 = vmatprep.subr.mxu0 0.0
      %710 = vmatpush1.msra.mxu0 0.0
      %711 = vmatprep.subr.mxu0 0.0
      %712 = vmatpush1.msra.mxu0 0.0
      %713 = vmatprep.subr.mxu0 0.0
      %714 = vmatpush1.msra.mxu0 0.0
      %715 = vmatprep.subr.mxu0 0.0
      %716 = vmatpush1.msra.mxu0 0.0
      %717 = vmatprep.subr.mxu0 0.0
      %718 = vmatpush1.msra.mxu0 0.0
      %719 = vmatprep.subr.mxu0 0.0
      %720 = vmatpush1.msra.mxu0 0.0
      %721 = vmatprep.subr.mxu0 0.0
      %722 = vmatpush1.msra.mxu0 0.0
      %723 = vmatprep.subr.mxu0 0.0
      %724 = vmatpush1.msra.mxu0 0.0
      %725 = vmatprep.subr.mxu0 0.0
      %726 = vmatpush1.msra.mxu0 0.0
      %727 = vmatprep.subr.mxu0 0.0
      %728 = vmatpush1.msra.mxu0 0.0
      %729 = vmatprep.subr.mxu0 0.0
      %730 = vmatpush1.msra.mxu0 0.0
      %731 = vmatprep.subr.mxu0 0.0
      %732 = vmatpush1.msra.mxu0 0.0
      %733 = vmatprep.subr.mxu0 0.0
      %734 = vmatpush1.msra.mxu0 0.0
      %735 = vmatprep.subr.mxu0 0.0
      %736 = vmatpush1.msra.mxu0 0.0
      %737 = vmatprep.subr.mxu0 0.0
      %738 = vmatpush1.msra.mxu0 0.0
      %739 = vmatprep.subr.mxu0 0.0
      %740 = vmatpush1.msra.mxu0 0.0
      %741 = vmatprep.subr.mxu0 0.0
      %742 = vmatpush1.msra.mxu0 0.0
      %743 = vmatprep.mubr.f32.mxu0 0.0
      %744 = vmatmul.mubr.f32.gmra.mrb[0].mxu0 %v656
      %v745 = vpop.f32.mrb[0].mxu0
      %v746 = vadd.f32 0.0, %v745
      %v747 = vpop.f32.mrb[0].mxu0
      %748 = vmatprep.mubr.f32.mxu0 0.0
      %749 = vmatmul.mubr.f32.gmra.mrb[0].mxu0 %v659
      %v750 = vpop.f32.mrb[0].mxu0
      %v751 = vadd.f32 0.0, %v750
      %v752 = vpop.f32.mrb[0].mxu0
      %753 = vmatprep.mubr.f32.mxu0 0.0
      %754 = vmatmul.mubr.f32.gmra.mrb[0].mxu0 %v662
      %v755 = vpop.f32.mrb[0].mxu0
      %v756 = vadd.f32 0.0, %v755
      %v757 = vpop.f32.mrb[0].mxu0
      %758 = vmatprep.mubr.f32.mxu0 0.0
      %759 = vmatmul.mubr.f32.gmra.mrb[0].mxu0 %v665
      %v760 = vpop.f32.mrb[0].mxu0
      %v761 = vadd.f32 0.0, %v760
      %v762 = vpop.f32.mrb[0].mxu0
      %763 = vmatprep.mubr.f32.mxu0 0.0
      %764 = vmatmul.mubr.f32.gmra.mrb[0].mxu0 %v668
      %v765 = vpop.f32.mrb[0].mxu0
      %v766 = vadd.f32 0.0, %v765
      %v767 = vpop.f32.mrb[0].mxu0
      %768 = vmatprep.mubr.f32.mxu0 0.0
      %769 = vmatmul.mubr.f32.gmra.mrb[0].mxu0 %v671
      %v770 = vpop.f32.mrb[0].mxu0
      %v771 = vadd.f32 0.0, %v770
      %v772 = vpop.f32.mrb[0].mxu0
      %773 = vmatprep.mubr.f32.mxu0 0.0
      %774 = vmatmul.mubr.f32.gmra.mrb[0].mxu0 %v674
      %v775 = vpop.f32.mrb[0].mxu0
      %v776 = vadd.f32 0.0, %v775
      %v777 = vpop.f32.mrb[0].mxu0
      %778 = vmatprep.mubr.f32.mxu0 0.0
      %779 = vmatmul.mubr.f32.gmra.mrb[0].mxu0 %v677
      %v780 = vpop.f32.mrb[0].mxu0
      %v781 = vadd.f32 0.0, %v780
      %v782 = vpop.f32.mrb[0].mxu0
      %783 = vdwg.mxu0
      %v784 = vcombine.low %v746, %v756
      %v785 = vcombine.high %v746, %v756
      %v787 = vunpack.c.l.s4 1983009808
      %v788 = vunpack.c.0.s8 %v787
      %v789 = vlaneseq
      %v790 = vshrl.u32 %v789, 7
      %v791 = vsub.s32 %v788, %v790
      %v792 = vrot.slane %v784, %v791
      %v794 = vunpack.c.l.s4 1983009808
      %v795 = vunpack.c.0.s8 %v794
      %v796 = vlaneseq
      %v797 = vshrl.u32 %v796, 7
      %v798 = vsub.s32 %v795, %v797
      %v799 = vrot.slane %v785, %v798
      %v800 = vcombine.low %v751, %v761
      %v801 = vcombine.high %v751, %v761
      %v803 = vunpack.c.l.s4 1983009808
      %v804 = vunpack.c.0.s8 %v803
      %v805 = vlaneseq
      %v806 = vshrl.u32 %v805, 7
      %v807 = vsub.s32 %v804, %v806
      %v808 = vrot.slane %v800, %v807
      %v810 = vunpack.c.l.s4 1983009808
      %v811 = vunpack.c.0.s8 %v810
      %v812 = vlaneseq
      %v813 = vshrl.u32 %v812, 7
      %v814 = vsub.s32 %v811, %v813
      %v815 = vrot.slane %v801, %v814
      %v816 = vcombine.low %v766, %v776
      %v817 = vcombine.high %v766, %v776
      %v819 = vunpack.c.l.s4 1983009808
      %v820 = vunpack.c.0.s8 %v819
      %v821 = vlaneseq
      %v822 = vshrl.u32 %v821, 7
      %v823 = vsub.s32 %v820, %v822
      %v824 = vrot.slane %v816, %v823
      %v826 = vunpack.c.l.s4 1983009808
      %v827 = vunpack.c.0.s8 %v826
      %v828 = vlaneseq
      %v829 = vshrl.u32 %v828, 7
      %v830 = vsub.s32 %v827, %v829
      %v831 = vrot.slane %v817, %v830
      %v832 = vcombine.low %v771, %v781
      %v833 = vcombine.high %v771, %v781
      %v835 = vunpack.c.l.s4 1983009808
      %v836 = vunpack.c.0.s8 %v835
      %v837 = vlaneseq
      %v838 = vshrl.u32 %v837, 7
      %v839 = vsub.s32 %v836, %v838
      %v840 = vrot.slane %v832, %v839
      %v842 = vunpack.c.l.s4 1983009808
      %v843 = vunpack.c.0.s8 %v842
      %v844 = vlaneseq
      %v845 = vshrl.u32 %v844, 7
      %v846 = vsub.s32 %v843, %v845
      %v847 = vrot.slane %v833, %v846
      %v848 = vcombine.low %v792, %v808
      %v849 = vcombine.high %v792, %v808
      %v851 = vunpack.c.l.s4 1934713408
      %v852 = vunpack.c.0.s8 %v851
      %v853 = vlaneseq
      %v854 = vshrl.u32 %v853, 7
      %v855 = vsub.s32 %v852, %v854
      %v856 = vrot.slane %v848, %v855
      %v858 = vunpack.c.l.s4 1934713408
      %v859 = vunpack.c.0.s8 %v858
      %v860 = vlaneseq
      %v861 = vshrl.u32 %v860, 7
      %v862 = vsub.s32 %v859, %v861
      %v863 = vrot.slane %v849, %v862
      %v864 = vcombine.low %v799, %v815
      %v865 = vcombine.high %v799, %v815
      %v867 = vunpack.c.l.s4 1934713408
      %v868 = vunpack.c.0.s8 %v867
      %v869 = vlaneseq
      %v870 = vshrl.u32 %v869, 7
      %v871 = vsub.s32 %v868, %v870
      %v872 = vrot.slane %v864, %v871
      %v874 = vunpack.c.l.s4 1934713408
      %v875 = vunpack.c.0.s8 %v874
      %v876 = vlaneseq
      %v877 = vshrl.u32 %v876, 7
      %v878 = vsub.s32 %v875, %v877
      %v879 = vrot.slane %v865, %v878
      %v880 = vcombine.low %v824, %v840
      %v881 = vcombine.high %v824, %v840
      %v883 = vunpack.c.l.s4 1934713408
      %v884 = vunpack.c.0.s8 %v883
      %v885 = vlaneseq
      %v886 = vshrl.u32 %v885, 7
      %v887 = vsub.s32 %v884, %v886
      %v888 = vrot.slane %v880, %v887
      %v890 = vunpack.c.l.s4 1934713408
      %v891 = vunpack.c.0.s8 %v890
      %v892 = vlaneseq
      %v893 = vshrl.u32 %v892, 7
      %v894 = vsub.s32 %v891, %v893
      %v895 = vrot.slane %v881, %v894
      %v896 = vcombine.low %v831, %v847
      %v897 = vcombine.high %v831, %v847
      %v899 = vunpack.c.l.s4 1934713408
      %v900 = vunpack.c.0.s8 %v899
      %v901 = vlaneseq
      %v902 = vshrl.u32 %v901, 7
      %v903 = vsub.s32 %v900, %v902
      %v904 = vrot.slane %v896, %v903
      %v906 = vunpack.c.l.s4 1934713408
      %v907 = vunpack.c.0.s8 %v906
      %v908 = vlaneseq
      %v909 = vshrl.u32 %v908, 7
      %v910 = vsub.s32 %v907, %v909
      %v911 = vrot.slane %v897, %v910
      %v912 = vcombine.low %v856, %v888
      %v913 = vcombine.high %v856, %v888
      %v914 = vcombine.low %v863, %v895
      %v915 = vcombine.high %v863, %v895
      %v916 = vcombine.low %v872, %v904
      %v917 = vcombine.high %v872, %v904
      %v918 = vcombine.low %v879, %v911
      %v919 = vcombine.high %v879, %v911
      %921 = vrot.lane.b32.xlu0 %v913, 16
      %v922 = vpop.permute.xlu0 %921
      %925 = vrot.lane.b32.xlu0 %v914, 32
      %v926 = vpop.permute.xlu0 %925
      %929 = vrot.lane.b32.xlu0 %v915, 48
      %v930 = vpop.permute.xlu0 %929
      %933 = vrot.lane.b32.xlu0 %v916, 64
      %v934 = vpop.permute.xlu0 %933
      %937 = vrot.lane.b32.xlu0 %v917, 80
      %v938 = vpop.permute.xlu0 %937
      %941 = vrot.lane.b32.xlu0 %v918, 96
      %v942 = vpop.permute.xlu0 %941
      %945 = vrot.lane.b32.xlu0 %v919, 112
      %v946 = vpop.permute.xlu0 %945
      %v948 = vsel %vm525, %v912, %v922
      %vm949 = vcmask 261120
      %v950 = vsel %vm949, %v948, %v926
      %vm951 = vcmask 392192
      %v952 = vsel %vm951, %v950, %v930
      %vm953 = vcmask 523264
      %v954 = vsel %vm953, %v952, %v934
      %vm955 = vcmask 654336
      %v956 = vsel %vm955, %v954, %v938
      %vm957 = vcmask 785408
      %v958 = vsel %vm957, %v956, %v942
      %vm959 = vcmask 916480
      %v960 = vsel %vm959, %v958, %v946
      %v961 = vcombine.low 0.0, 0.0
      %v962 = vcombine.high 0.0, 0.0
      %v964 = vunpack.c.l.s4 1983009808
      %v965 = vunpack.c.0.s8 %v964
      %v966 = vlaneseq
      %v967 = vshrl.u32 %v966, 7
      %v968 = vsub.s32 %v965, %v967
      %v969 = vrot.slane %v961, %v968
      %v971 = vunpack.c.l.s4 1983009808
      %v972 = vunpack.c.0.s8 %v971
      %v973 = vlaneseq
      %v974 = vshrl.u32 %v973, 7
      %v975 = vsub.s32 %v972, %v974
      %v976 = vrot.slane %v962, %v975
      %v977 = vcombine.low %v969, %v969
      %v978 = vcombine.high %v969, %v969
      %v980 = vunpack.c.l.s4 1934713408
      %v981 = vunpack.c.0.s8 %v980
      %v982 = vlaneseq
      %v983 = vshrl.u32 %v982, 7
      %v984 = vsub.s32 %v981, %v983
      %v985 = vrot.slane %v977, %v984
      %v987 = vunpack.c.l.s4 1934713408
      %v988 = vunpack.c.0.s8 %v987
      %v989 = vlaneseq
      %v990 = vshrl.u32 %v989, 7
      %v991 = vsub.s32 %v988, %v990
      %v992 = vrot.slane %v978, %v991
      %v993 = vcombine.low %v976, %v976
      %v994 = vcombine.high %v976, %v976
      %v996 = vunpack.c.l.s4 1934713408
      %v997 = vunpack.c.0.s8 %v996
      %v998 = vlaneseq
      %v999 = vshrl.u32 %v998, 7
      %v1000 = vsub.s32 %v997, %v999
      %v1001 = vrot.slane %v993, %v1000
      %v1003 = vunpack.c.l.s4 1934713408
      %v1004 = vunpack.c.0.s8 %v1003
      %v1005 = vlaneseq
      %v1006 = vshrl.u32 %v1005, 7
      %v1007 = vsub.s32 %v1004, %v1006
      %v1008 = vrot.slane %v994, %v1007
      %v1009 = vcombine.low %v985, %v985
      %v1010 = vcombine.high %v985, %v985
      %v1011 = vcombine.low %v992, %v992
      %v1012 = vcombine.high %v992, %v992
      %v1013 = vcombine.low %v1001, %v1001
      %v1014 = vcombine.high %v1001, %v1001
      %v1015 = vcombine.low %v1008, %v1008
      %v1016 = vcombine.high %v1008, %v1008
      %1018 = vrot.lane.b32.xlu0 %v1010, 16
      %v1019 = vpop.permute.xlu0 %1018
      %1022 = vrot.lane.b32.xlu0 %v1011, 32
      %v1023 = vpop.permute.xlu0 %1022
      %1026 = vrot.lane.b32.xlu0 %v1012, 48
      %v1027 = vpop.permute.xlu0 %1026
      %1030 = vrot.lane.b32.xlu0 %v1013, 64
      %v1031 = vpop.permute.xlu0 %1030
      %1034 = vrot.lane.b32.xlu0 %v1014, 80
      %v1035 = vpop.permute.xlu0 %1034
      %1038 = vrot.lane.b32.xlu0 %v1015, 96
      %v1039 = vpop.permute.xlu0 %1038
      %1042 = vrot.lane.b32.xlu0 %v1016, 112
      %v1043 = vpop.permute.xlu0 %1042
      %v1045 = vsel %vm525, %v1009, %v1019
      %v1046 = vsel %vm949, %v1045, %v1023
      %v1047 = vsel %vm951, %v1046, %v1027
      %v1048 = vsel %vm953, %v1047, %v1031
      %v1049 = vsel %vm955, %v1048, %v1035
      %v1050 = vsel %vm957, %v1049, %v1039
      %v1051 = vsel %vm959, %v1050, %v1043
      %vm1052 = vcmask 64512
      %v1054 = vsel %vm1052, %v471, 0
      %1056 = vmatprep.subr.mxu0 0.0
      %1057 = vmatpush1.msra.mxu0 %v960
      %1058 = vmatprep.subr.mxu0 0.0
      %1059 = vmatpush1.msra.mxu0 0.0
      %1060 = vmatprep.subr.mxu0 0.0
      %1061 = vmatpush1.msra.mxu0 0.0
      %1062 = vmatprep.subr.mxu0 0.0
      %1063 = vmatpush1.msra.mxu0 0.0
      %1064 = vmatprep.subr.mxu0 0.0
      %1065 = vmatpush1.msra.mxu0 0.0
      %1066 = vmatprep.subr.mxu0 0.0
      %1067 = vmatpush1.msra.mxu0 0.0
      %1068 = vmatprep.subr.mxu0 0.0
      %1069 = vmatpush1.msra.mxu0 0.0
      %1070 = vmatprep.subr.mxu0 0.0
      %1071 = vmatpush1.msra.mxu0 0.0
      %1072 = vmatprep.subr.mxu0 0.0
      %1073 = vmatpush1.msra.mxu0 0.0
      %1074 = vmatprep.subr.mxu0 0.0
      %1075 = vmatpush1.msra.mxu0 0.0
      %1076 = vmatprep.subr.mxu0 0.0
      %1077 = vmatpush1.msra.mxu0 0.0
      %1078 = vmatprep.subr.mxu0 0.0
      %1079 = vmatpush1.msra.mxu0 0.0
      %1080 = vmatprep.subr.mxu0 0.0
      %1081 = vmatpush1.msra.mxu0 0.0
      %1082 = vmatprep.subr.mxu0 0.0
      %1083 = vmatpush1.msra.mxu0 0.0
      %1084 = vmatprep.subr.mxu0 0.0
      %1085 = vmatpush1.msra.mxu0 0.0
      %1086 = vmatprep.subr.mxu0 0.0
      %1087 = vmatpush1.msra.mxu0 0.0
      %1088 = vmatprep.subr.mxu0 0.0
      %1089 = vmatpush1.msra.mxu0 0.0
      %1090 = vmatprep.subr.mxu0 0.0
      %1091 = vmatpush1.msra.mxu0 0.0
      %1092 = vmatprep.subr.mxu0 0.0
      %1093 = vmatpush1.msra.mxu0 0.0
      %1094 = vmatprep.subr.mxu0 0.0
      %1095 = vmatpush1.msra.mxu0 0.0
      %1096 = vmatprep.subr.mxu0 0.0
      %1097 = vmatpush1.msra.mxu0 0.0
      %1098 = vmatprep.subr.mxu0 0.0
      %1099 = vmatpush1.msra.mxu0 0.0
      %1100 = vmatprep.subr.mxu0 0.0
      %1101 = vmatpush1.msra.mxu0 0.0
      %1102 = vmatprep.subr.mxu0 0.0
      %1103 = vmatpush1.msra.mxu0 0.0
      %1104 = vmatprep.subr.mxu0 0.0
      %1105 = vmatpush1.msra.mxu0 0.0
      %1106 = vmatprep.subr.mxu0 0.0
      %1107 = vmatpush1.msra.mxu0 0.0
      %1108 = vmatprep.subr.mxu0 0.0
      %1109 = vmatpush1.msra.mxu0 0.0
      %1110 = vmatprep.subr.mxu0 0.0
      %1111 = vmatpush1.msra.mxu0 0.0
      %1112 = vmatprep.subr.mxu0 0.0
      %1113 = vmatpush1.msra.mxu0 0.0
      %1114 = vmatprep.subr.mxu0 0.0
      %1115 = vmatpush1.msra.mxu0 0.0
      %1116 = vmatprep.subr.mxu0 0.0
      %1117 = vmatpush1.msra.mxu0 0.0
      %1118 = vmatprep.subr.mxu0 0.0
      %1119 = vmatpush1.msra.mxu0 0.0
      %1120 = vmatprep.mubr.f32.mxu0 0.0
      %1121 = vmatmul.mubr.f32.gmra.mrb[0].mxu0 %v1054
      %v1122 = vpop.f32.mrb[0].mxu0
      %v1123 = vadd.f32 %v1051, %v1122
      %v1124 = vpop.f32.mrb[0].mxu0
      %1125 = vdwg.mxu0
      %1127 = vrot.lane.b32.xlu0 %v1123, 112
      %v1128 = vpop.permute.xlu0 %1127
      %1130 = vrot.lane.b32.xlu0 %v1123, 96
      %v1131 = vpop.permute.xlu0 %1130
      %1133 = vrot.lane.b32.xlu0 %v1123, 80
      %v1134 = vpop.permute.xlu0 %1133
      %1136 = vrot.lane.b32.xlu0 %v1123, 64
      %v1137 = vpop.permute.xlu0 %1136
      %1139 = vrot.lane.b32.xlu0 %v1123, 48
      %v1140 = vpop.permute.xlu0 %1139
      %1142 = vrot.lane.b32.xlu0 %v1123, 32
      %v1143 = vpop.permute.xlu0 %1142
      %1145 = vrot.lane.b32.xlu0 %v1123, 16
      %v1146 = vpop.permute.xlu0 %1145
      %v1148 = vcombine.low %v1123, %v1131
      %v1149 = vcombine.high %v1123, %v1131
      %v1151 = vunpack.c.l.s4 1983009808
      %v1152 = vunpack.c.0.s8 %v1151
      %v1153 = vlaneseq
      %v1154 = vshrl.u32 %v1153, 7
      %v1155 = vsub.s32 %v1152, %v1154
      %v1156 = vrot.slane %v1148, %v1155
      %v1158 = vunpack.c.l.s4 1983009808
      %v1159 = vunpack.c.0.s8 %v1158
      %v1160 = vlaneseq
      %v1161 = vshrl.u32 %v1160, 7
      %v1162 = vsub.s32 %v1159, %v1161
      %v1163 = vrot.slane %v1149, %v1162
      %v1164 = vcombine.low %v1128, %v1134
      %v1165 = vcombine.high %v1128, %v1134
      %v1167 = vunpack.c.l.s4 1983009808
      %v1168 = vunpack.c.0.s8 %v1167
      %v1169 = vlaneseq
      %v1170 = vshrl.u32 %v1169, 7
      %v1171 = vsub.s32 %v1168, %v1170
      %v1172 = vrot.slane %v1164, %v1171
      %v1174 = vunpack.c.l.s4 1983009808
      %v1175 = vunpack.c.0.s8 %v1174
      %v1176 = vlaneseq
      %v1177 = vshrl.u32 %v1176, 7
      %v1178 = vsub.s32 %v1175, %v1177
      %v1179 = vrot.slane %v1165, %v1178
      %v1180 = vcombine.low %v1137, %v1143
      %v1181 = vcombine.high %v1137, %v1143
      %v1183 = vunpack.c.l.s4 1983009808
      %v1184 = vunpack.c.0.s8 %v1183
      %v1185 = vlaneseq
      %v1186 = vshrl.u32 %v1185, 7
      %v1187 = vsub.s32 %v1184, %v1186
      %v1188 = vrot.slane %v1180, %v1187
      %v1190 = vunpack.c.l.s4 1983009808
      %v1191 = vunpack.c.0.s8 %v1190
      %v1192 = vlaneseq
      %v1193 = vshrl.u32 %v1192, 7
      %v1194 = vsub.s32 %v1191, %v1193
      %v1195 = vrot.slane %v1181, %v1194
      %v1196 = vcombine.low %v1140, %v1146
      %v1197 = vcombine.high %v1140, %v1146
      %v1199 = vunpack.c.l.s4 1983009808
      %v1200 = vunpack.c.0.s8 %v1199
      %v1201 = vlaneseq
      %v1202 = vshrl.u32 %v1201, 7
      %v1203 = vsub.s32 %v1200, %v1202
      %v1204 = vrot.slane %v1196, %v1203
      %v1206 = vunpack.c.l.s4 1983009808
      %v1207 = vunpack.c.0.s8 %v1206
      %v1208 = vlaneseq
      %v1209 = vshrl.u32 %v1208, 7
      %v1210 = vsub.s32 %v1207, %v1209
      %v1211 = vrot.slane %v1197, %v1210
      %v1212 = vcombine.low %v1156, %v1172
      %v1213 = vcombine.high %v1156, %v1172
      %v1215 = vunpack.c.l.s4 1934713408
      %v1216 = vunpack.c.0.s8 %v1215
      %v1217 = vlaneseq
      %v1218 = vshrl.u32 %v1217, 7
      %v1219 = vsub.s32 %v1216, %v1218
      %v1220 = vrot.slane %v1212, %v1219
      %v1222 = vunpack.c.l.s4 1934713408
      %v1223 = vunpack.c.0.s8 %v1222
      %v1224 = vlaneseq
      %v1225 = vshrl.u32 %v1224, 7
      %v1226 = vsub.s32 %v1223, %v1225
      %v1227 = vrot.slane %v1213, %v1226
      %v1228 = vcombine.low %v1163, %v1179
      %v1229 = vcombine.high %v1163, %v1179
      %v1231 = vunpack.c.l.s4 1934713408
      %v1232 = vunpack.c.0.s8 %v1231
      %v1233 = vlaneseq
      %v1234 = vshrl.u32 %v1233, 7
      %v1235 = vsub.s32 %v1232, %v1234
      %v1236 = vrot.slane %v1228, %v1235
      %v1238 = vunpack.c.l.s4 1934713408
      %v1239 = vunpack.c.0.s8 %v1238
      %v1240 = vlaneseq
      %v1241 = vshrl.u32 %v1240, 7
      %v1242 = vsub.s32 %v1239, %v1241
      %v1243 = vrot.slane %v1229, %v1242
      %v1244 = vcombine.low %v1188, %v1204
      %v1245 = vcombine.high %v1188, %v1204
      %v1247 = vunpack.c.l.s4 1934713408
      %v1248 = vunpack.c.0.s8 %v1247
      %v1249 = vlaneseq
      %v1250 = vshrl.u32 %v1249, 7
      %v1251 = vsub.s32 %v1248, %v1250
      %v1252 = vrot.slane %v1244, %v1251
      %v1254 = vunpack.c.l.s4 1934713408
      %v1255 = vunpack.c.0.s8 %v1254
      %v1256 = vlaneseq
      %v1257 = vshrl.u32 %v1256, 7
      %v1258 = vsub.s32 %v1255, %v1257
      %v1259 = vrot.slane %v1245, %v1258
      %v1260 = vcombine.low %v1195, %v1211
      %v1261 = vcombine.high %v1195, %v1211
      %v1263 = vunpack.c.l.s4 1934713408
      %v1264 = vunpack.c.0.s8 %v1263
      %v1265 = vlaneseq
      %v1266 = vshrl.u32 %v1265, 7
      %v1267 = vsub.s32 %v1264, %v1266
      %v1268 = vrot.slane %v1260, %v1267
      %v1270 = vunpack.c.l.s4 1934713408
      %v1271 = vunpack.c.0.s8 %v1270
      %v1272 = vlaneseq
      %v1273 = vshrl.u32 %v1272, 7
      %v1274 = vsub.s32 %v1271, %v1273
      %v1275 = vrot.slane %v1261, %v1274
      %v1276 = vcombine.low %v1220, %v1252
      %v1277 = vcombine.high %v1220, %v1252
      %v1278 = vcombine.low %v1227, %v1259
      %v1279 = vcombine.high %v1227, %v1259
      %v1280 = vcombine.low %v1236, %v1268
      %v1281 = vcombine.high %v1236, %v1268
      %v1282 = vcombine.low %v1243, %v1275
      %v1283 = vcombine.high %v1243, %v1275
      %v1284 = vcombine.low %v617, %v627
      %v1285 = vcombine.high %v617, %v627
      %v1287 = vunpack.c.l.s4 1983009808
      %v1288 = vunpack.c.0.s8 %v1287
      %v1289 = vlaneseq
      %v1290 = vshrl.u32 %v1289, 7
      %v1291 = vsub.s32 %v1288, %v1290
      %v1292 = vrot.slane %v1284, %v1291
      %v1294 = vunpack.c.l.s4 1983009808
      %v1295 = vunpack.c.0.s8 %v1294
      %v1296 = vlaneseq
      %v1297 = vshrl.u32 %v1296, 7
      %v1298 = vsub.s32 %v1295, %v1297
      %v1299 = vrot.slane %v1285, %v1298
      %v1300 = vcombine.low %v622, %v632
      %v1301 = vcombine.high %v622, %v632
      %v1303 = vunpack.c.l.s4 1983009808
      %v1304 = vunpack.c.0.s8 %v1303
      %v1305 = vlaneseq
      %v1306 = vshrl.u32 %v1305, 7
      %v1307 = vsub.s32 %v1304, %v1306
      %v1308 = vrot.slane %v1300, %v1307
      %v1310 = vunpack.c.l.s4 1983009808
      %v1311 = vunpack.c.0.s8 %v1310
      %v1312 = vlaneseq
      %v1313 = vshrl.u32 %v1312, 7
      %v1314 = vsub.s32 %v1311, %v1313
      %v1315 = vrot.slane %v1301, %v1314
      %v1316 = vcombine.low %v637, %v647
      %v1317 = vcombine.high %v637, %v647
      %v1319 = vunpack.c.l.s4 1983009808
      %v1320 = vunpack.c.0.s8 %v1319
      %v1321 = vlaneseq
      %v1322 = vshrl.u32 %v1321, 7
      %v1323 = vsub.s32 %v1320, %v1322
      %v1324 = vrot.slane %v1316, %v1323
      %v1326 = vunpack.c.l.s4 1983009808
      %v1327 = vunpack.c.0.s8 %v1326
      %v1328 = vlaneseq
      %v1329 = vshrl.u32 %v1328, 7
      %v1330 = vsub.s32 %v1327, %v1329
      %v1331 = vrot.slane %v1317, %v1330
      %v1332 = vcombine.low %v642, %v652
      %v1333 = vcombine.high %v642, %v652
      %v1335 = vunpack.c.l.s4 1983009808
      %v1336 = vunpack.c.0.s8 %v1335
      %v1337 = vlaneseq
      %v1338 = vshrl.u32 %v1337, 7
      %v1339 = vsub.s32 %v1336, %v1338
      %v1340 = vrot.slane %v1332, %v1339
      %v1342 = vunpack.c.l.s4 1983009808
      %v1343 = vunpack.c.0.s8 %v1342
      %v1344 = vlaneseq
      %v1345 = vshrl.u32 %v1344, 7
      %v1346 = vsub.s32 %v1343, %v1345
      %v1347 = vrot.slane %v1333, %v1346
      %v1348 = vcombine.low %v1292, %v1308
      %v1349 = vcombine.high %v1292, %v1308
      %v1351 = vunpack.c.l.s4 1934713408
      %v1352 = vunpack.c.0.s8 %v1351
      %v1353 = vlaneseq
      %v1354 = vshrl.u32 %v1353, 7
      %v1355 = vsub.s32 %v1352, %v1354
      %v1356 = vrot.slane %v1348, %v1355
      %v1358 = vunpack.c.l.s4 1934713408
      %v1359 = vunpack.c.0.s8 %v1358
      %v1360 = vlaneseq
      %v1361 = vshrl.u32 %v1360, 7
      %v1362 = vsub.s32 %v1359, %v1361
      %v1363 = vrot.slane %v1349, %v1362
      %v1364 = vcombine.low %v1299, %v1315
      %v1365 = vcombine.high %v1299, %v1315
      %v1367 = vunpack.c.l.s4 1934713408
      %v1368 = vunpack.c.0.s8 %v1367
      %v1369 = vlaneseq
      %v1370 = vshrl.u32 %v1369, 7
      %v1371 = vsub.s32 %v1368, %v1370
      %v1372 = vrot.slane %v1364, %v1371
      %v1374 = vunpack.c.l.s4 1934713408
      %v1375 = vunpack.c.0.s8 %v1374
      %v1376 = vlaneseq
      %v1377 = vshrl.u32 %v1376, 7
      %v1378 = vsub.s32 %v1375, %v1377
      %v1379 = vrot.slane %v1365, %v1378
      %v1380 = vcombine.low %v1324, %v1340
      %v1381 = vcombine.high %v1324, %v1340
      %v1383 = vunpack.c.l.s4 1934713408
      %v1384 = vunpack.c.0.s8 %v1383
      %v1385 = vlaneseq
      %v1386 = vshrl.u32 %v1385, 7
      %v1387 = vsub.s32 %v1384, %v1386
      %v1388 = vrot.slane %v1380, %v1387
      %v1390 = vunpack.c.l.s4 1934713408
      %v1391 = vunpack.c.0.s8 %v1390
      %v1392 = vlaneseq
      %v1393 = vshrl.u32 %v1392, 7
      %v1394 = vsub.s32 %v1391, %v1393
      %v1395 = vrot.slane %v1381, %v1394
      %v1396 = vcombine.low %v1331, %v1347
      %v1397 = vcombine.high %v1331, %v1347
      %v1399 = vunpack.c.l.s4 1934713408
      %v1400 = vunpack.c.0.s8 %v1399
      %v1401 = vlaneseq
      %v1402 = vshrl.u32 %v1401, 7
      %v1403 = vsub.s32 %v1400, %v1402
      %v1404 = vrot.slane %v1396, %v1403
      %v1406 = vunpack.c.l.s4 1934713408
      %v1407 = vunpack.c.0.s8 %v1406
      %v1408 = vlaneseq
      %v1409 = vshrl.u32 %v1408, 7
      %v1410 = vsub.s32 %v1407, %v1409
      %v1411 = vrot.slane %v1397, %v1410
      %v1412 = vcombine.low %v1356, %v1388
      %v1413 = vcombine.high %v1356, %v1388
      %v1414 = vcombine.low %v1363, %v1395
      %v1415 = vcombine.high %v1363, %v1395
      %v1416 = vcombine.low %v1372, %v1404
      %v1417 = vcombine.high %v1372, %v1404
      %v1418 = vcombine.low %v1379, %v1411
      %v1419 = vcombine.high %v1379, %v1411
      %1421 = vrot.lane.b32.xlu0 %v1413, 16
      %v1422 = vpop.permute.xlu0 %1421
      %1425 = vrot.lane.b32.xlu0 %v1414, 32
      %v1426 = vpop.permute.xlu0 %1425
      %1429 = vrot.lane.b32.xlu0 %v1415, 48
      %v1430 = vpop.permute.xlu0 %1429
      %1433 = vrot.lane.b32.xlu0 %v1416, 64
      %v1434 = vpop.permute.xlu0 %1433
      %1437 = vrot.lane.b32.xlu0 %v1417, 80
      %v1438 = vpop.permute.xlu0 %1437
      %1441 = vrot.lane.b32.xlu0 %v1418, 96
      %v1442 = vpop.permute.xlu0 %1441
      %1445 = vrot.lane.b32.xlu0 %v1419, 112
      %v1446 = vpop.permute.xlu0 %1445
      %v1448 = vsel %vm525, %v1412, %v1422
      %v1449 = vsel %vm949, %v1448, %v1426
      %v1450 = vsel %vm951, %v1449, %v1430
      %v1451 = vsel %vm953, %v1450, %v1434
      %v1452 = vsel %vm955, %v1451, %v1438
      %v1453 = vsel %vm957, %v1452, %v1442
      %v1454 = vsel %vm959, %v1453, %v1446
      %v1455 = vcombine.low %v1276, %v1278
      %v1456 = vcombine.high %v1276, %v1278
      %v1458 = vunpack.c.l.s4 1983009808
      %v1459 = vunpack.c.0.s8 %v1458
      %v1460 = vlaneseq
      %v1461 = vshrl.u32 %v1460, 7
      %v1462 = vsub.s32 %v1459, %v1461
      %v1463 = vrot.slane %v1455, %v1462
      %v1465 = vunpack.c.l.s4 1983009808
      %v1466 = vunpack.c.0.s8 %v1465
      %v1467 = vlaneseq
      %v1468 = vshrl.u32 %v1467, 7
      %v1469 = vsub.s32 %v1466, %v1468
      %v1470 = vrot.slane %v1456, %v1469
      %v1471 = vcombine.low %v1277, %v1279
      %v1472 = vcombine.high %v1277, %v1279
      %v1474 = vunpack.c.l.s4 1983009808
      %v1475 = vunpack.c.0.s8 %v1474
      %v1476 = vlaneseq
      %v1477 = vshrl.u32 %v1476, 7
      %v1478 = vsub.s32 %v1475, %v1477
      %v1479 = vrot.slane %v1471, %v1478
      %v1481 = vunpack.c.l.s4 1983009808
      %v1482 = vunpack.c.0.s8 %v1481
      %v1483 = vlaneseq
      %v1484 = vshrl.u32 %v1483, 7
      %v1485 = vsub.s32 %v1482, %v1484
      %v1486 = vrot.slane %v1472, %v1485
      %v1487 = vcombine.low %v1280, %v1282
      %v1488 = vcombine.high %v1280, %v1282
      %v1490 = vunpack.c.l.s4 1983009808
      %v1491 = vunpack.c.0.s8 %v1490
      %v1492 = vlaneseq
      %v1493 = vshrl.u32 %v1492, 7
      %v1494 = vsub.s32 %v1491, %v1493
      %v1495 = vrot.slane %v1487, %v1494
      %v1497 = vunpack.c.l.s4 1983009808
      %v1498 = vunpack.c.0.s8 %v1497
      %v1499 = vlaneseq
      %v1500 = vshrl.u32 %v1499, 7
      %v1501 = vsub.s32 %v1498, %v1500
      %v1502 = vrot.slane %v1488, %v1501
      %v1503 = vcombine.low %v1281, %v1283
      %v1504 = vcombine.high %v1281, %v1283
      %v1506 = vunpack.c.l.s4 1983009808
      %v1507 = vunpack.c.0.s8 %v1506
      %v1508 = vlaneseq
      %v1509 = vshrl.u32 %v1508, 7
      %v1510 = vsub.s32 %v1507, %v1509
      %v1511 = vrot.slane %v1503, %v1510
      %v1513 = vunpack.c.l.s4 1983009808
      %v1514 = vunpack.c.0.s8 %v1513
      %v1515 = vlaneseq
      %v1516 = vshrl.u32 %v1515, 7
      %v1517 = vsub.s32 %v1514, %v1516
      %v1518 = vrot.slane %v1504, %v1517
      %v1519 = vcombine.low %v1463, %v1479
      %v1520 = vcombine.high %v1463, %v1479
      %v1522 = vunpack.c.l.s4 1934713408
      %v1523 = vunpack.c.0.s8 %v1522
      %v1524 = vlaneseq
      %v1525 = vshrl.u32 %v1524, 7
      %v1526 = vsub.s32 %v1523, %v1525
      %v1527 = vrot.slane %v1519, %v1526
      %v1529 = vunpack.c.l.s4 1934713408
      %v1530 = vunpack.c.0.s8 %v1529
      %v1531 = vlaneseq
      %v1532 = vshrl.u32 %v1531, 7
      %v1533 = vsub.s32 %v1530, %v1532
      %v1534 = vrot.slane %v1520, %v1533
      %v1535 = vcombine.low %v1470, %v1486
      %v1536 = vcombine.high %v1470, %v1486
      %v1538 = vunpack.c.l.s4 1934713408
      %v1539 = vunpack.c.0.s8 %v1538
      %v1540 = vlaneseq
      %v1541 = vshrl.u32 %v1540, 7
      %v1542 = vsub.s32 %v1539, %v1541
      %v1543 = vrot.slane %v1535, %v1542
      %v1545 = vunpack.c.l.s4 1934713408
      %v1546 = vunpack.c.0.s8 %v1545
      %v1547 = vlaneseq
      %v1548 = vshrl.u32 %v1547, 7
      %v1549 = vsub.s32 %v1546, %v1548
      %v1550 = vrot.slane %v1536, %v1549
      %v1551 = vcombine.low %v1495, %v1511
      %v1552 = vcombine.high %v1495, %v1511
      %v1554 = vunpack.c.l.s4 1934713408
      %v1555 = vunpack.c.0.s8 %v1554
      %v1556 = vlaneseq
      %v1557 = vshrl.u32 %v1556, 7
      %v1558 = vsub.s32 %v1555, %v1557
      %v1559 = vrot.slane %v1551, %v1558
      %v1561 = vunpack.c.l.s4 1934713408
      %v1562 = vunpack.c.0.s8 %v1561
      %v1563 = vlaneseq
      %v1564 = vshrl.u32 %v1563, 7
      %v1565 = vsub.s32 %v1562, %v1564
      %v1566 = vrot.slane %v1552, %v1565
      %v1567 = vcombine.low %v1502, %v1518
      %v1568 = vcombine.high %v1502, %v1518
      %v1570 = vunpack.c.l.s4 1934713408
      %v1571 = vunpack.c.0.s8 %v1570
      %v1572 = vlaneseq
      %v1573 = vshrl.u32 %v1572, 7
      %v1574 = vsub.s32 %v1571, %v1573
      %v1575 = vrot.slane %v1567, %v1574
      %v1577 = vunpack.c.l.s4 1934713408
      %v1578 = vunpack.c.0.s8 %v1577
      %v1579 = vlaneseq
      %v1580 = vshrl.u32 %v1579, 7
      %v1581 = vsub.s32 %v1578, %v1580
      %v1582 = vrot.slane %v1568, %v1581
      %v1583 = vcombine.low %v1527, %v1559
      %v1584 = vcombine.high %v1527, %v1559
      %v1585 = vcombine.low %v1534, %v1566
      %v1586 = vcombine.high %v1534, %v1566
      %v1587 = vcombine.low %v1543, %v1575
      %v1588 = vcombine.high %v1543, %v1575
      %v1589 = vcombine.low %v1550, %v1582
      %v1590 = vcombine.high %v1550, %v1582
      %1592 = vrot.lane.b32.xlu0 %v1584, 16
      %v1593 = vpop.permute.xlu0 %1592
      %1596 = vrot.lane.b32.xlu0 %v1585, 32
      %v1597 = vpop.permute.xlu0 %1596
      %1600 = vrot.lane.b32.xlu0 %v1586, 48
      %v1601 = vpop.permute.xlu0 %1600
      %1604 = vrot.lane.b32.xlu0 %v1587, 64
      %v1605 = vpop.permute.xlu0 %1604
      %1608 = vrot.lane.b32.xlu0 %v1588, 80
      %v1609 = vpop.permute.xlu0 %1608
      %1612 = vrot.lane.b32.xlu0 %v1589, 96
      %v1613 = vpop.permute.xlu0 %1612
      %1616 = vrot.lane.b32.xlu0 %v1590, 112
      %v1617 = vpop.permute.xlu0 %1616
      %v1619 = vsel %vm525, %v1583, %v1593
      %v1620 = vsel %vm949, %v1619, %v1597
      %v1621 = vsel %vm951, %v1620, %v1601
      %v1622 = vsel %vm953, %v1621, %v1605
      %v1623 = vsel %vm955, %v1622, %v1609
      %v1624 = vsel %vm957, %v1623, %v1613
      %v1625 = vsel %vm959, %v1624, %v1617
      %v1627 = vsel %vm1052, %v470, 0
      %1629 = vmatprep.subr.mxu0 0.0
      %1630 = vmatpush1.msra.mxu0 %v1454
      %1631 = vmatprep.subr.mxu0 0.0
      %1632 = vmatpush1.msra.mxu0 0.0
      %1633 = vmatprep.subr.mxu0 0.0
      %1634 = vmatpush1.msra.mxu0 0.0
      %1635 = vmatprep.subr.mxu0 0.0
      %1636 = vmatpush1.msra.mxu0 0.0
      %1637 = vmatprep.subr.mxu0 0.0
      %1638 = vmatpush1.msra.mxu0 0.0
      %1639 = vmatprep.subr.mxu0 0.0
      %1640 = vmatpush1.msra.mxu0 0.0
      %1641 = vmatprep.subr.mxu0 0.0
      %1642 = vmatpush1.msra.mxu0 0.0
      %1643 = vmatprep.subr.mxu0 0.0
      %1644 = vmatpush1.msra.mxu0 0.0
      %1645 = vmatprep.subr.mxu0 0.0
      %1646 = vmatpush1.msra.mxu0 0.0
      %1647 = vmatprep.subr.mxu0 0.0
      %1648 = vmatpush1.msra.mxu0 0.0
      %1649 = vmatprep.subr.mxu0 0.0
      %1650 = vmatpush1.msra.mxu0 0.0
      %1651 = vmatprep.subr.mxu0 0.0
      %1652 = vmatpush1.msra.mxu0 0.0
      %1653 = vmatprep.subr.mxu0 0.0
      %1654 = vmatpush1.msra.mxu0 0.0
      %1655 = vmatprep.subr.mxu0 0.0
      %1656 = vmatpush1.msra.mxu0 0.0
      %1657 = vmatprep.subr.mxu0 0.0
      %1658 = vmatpush1.msra.mxu0 0.0
      %1659 = vmatprep.subr.mxu0 0.0
      %1660 = vmatpush1.msra.mxu0 0.0
      %1661 = vmatprep.subr.mxu0 0.0
      %1662 = vmatpush1.msra.mxu0 0.0
      %1663 = vmatprep.subr.mxu0 0.0
      %1664 = vmatpush1.msra.mxu0 0.0
      %1665 = vmatprep.subr.mxu0 0.0
      %1666 = vmatpush1.msra.mxu0 0.0
      %1667 = vmatprep.subr.mxu0 0.0
      %1668 = vmatpush1.msra.mxu0 0.0
      %1669 = vmatprep.subr.mxu0 0.0
      %1670 = vmatpush1.msra.mxu0 0.0
      %1671 = vmatprep.subr.mxu0 0.0
      %1672 = vmatpush1.msra.mxu0 0.0
      %1673 = vmatprep.subr.mxu0 0.0
      %1674 = vmatpush1.msra.mxu0 0.0
      %1675 = vmatprep.subr.mxu0 0.0
      %1676 = vmatpush1.msra.mxu0 0.0
      %1677 = vmatprep.subr.mxu0 0.0
      %1678 = vmatpush1.msra.mxu0 0.0
      %1679 = vmatprep.subr.mxu0 0.0
      %1680 = vmatpush1.msra.mxu0 0.0
      %1681 = vmatprep.subr.mxu0 0.0
      %1682 = vmatpush1.msra.mxu0 0.0
      %1683 = vmatprep.subr.mxu0 0.0
      %1684 = vmatpush1.msra.mxu0 0.0
      %1685 = vmatprep.subr.mxu0 0.0
      %1686 = vmatpush1.msra.mxu0 0.0
      %1687 = vmatprep.subr.mxu0 0.0
      %1688 = vmatpush1.msra.mxu0 0.0
      %1689 = vmatprep.subr.mxu0 0.0
      %1690 = vmatpush1.msra.mxu0 0.0
      %1691 = vmatprep.subr.mxu0 0.0
      %1692 = vmatpush1.msra.mxu0 0.0
      %1693 = vmatprep.mubr.f32.mxu0 0.0
      %1694 = vmatmul.mubr.f32.gmra.mrb[0].mxu0 %v1627
      %v1695 = vpop.f32.mrb[0].mxu0
      %v1696 = vadd.f32 %v1625, %v1695
      %v1697 = vpop.f32.mrb[0].mxu0
      %1698 = vdwg.mxu0
      %1700 = vrot.lane.b32.xlu0 %v1696, 112
      %v1701 = vpop.permute.xlu0 %1700
      %1703 = vrot.lane.b32.xlu0 %v1696, 96
      %v1704 = vpop.permute.xlu0 %1703
      %1706 = vrot.lane.b32.xlu0 %v1696, 80
      %v1707 = vpop.permute.xlu0 %1706
      %1709 = vrot.lane.b32.xlu0 %v1696, 64
      %v1710 = vpop.permute.xlu0 %1709
      %1712 = vrot.lane.b32.xlu0 %v1696, 48
      %v1713 = vpop.permute.xlu0 %1712
      %1715 = vrot.lane.b32.xlu0 %v1696, 32
      %v1716 = vpop.permute.xlu0 %1715
      %1718 = vrot.lane.b32.xlu0 %v1696, 16
      %v1719 = vpop.permute.xlu0 %1718
      %v1721 = vcombine.low %v1696, %v1704
      %v1722 = vcombine.high %v1696, %v1704
      %v1724 = vunpack.c.l.s4 1983009808
      %v1725 = vunpack.c.0.s8 %v1724
      %v1726 = vlaneseq
      %v1727 = vshrl.u32 %v1726, 7
      %v1728 = vsub.s32 %v1725, %v1727
      %v1729 = vrot.slane %v1721, %v1728
      %v1731 = vunpack.c.l.s4 1983009808
      %v1732 = vunpack.c.0.s8 %v1731
      %v1733 = vlaneseq
      %v1734 = vshrl.u32 %v1733, 7
      %v1735 = vsub.s32 %v1732, %v1734
      %v1736 = vrot.slane %v1722, %v1735
      %v1737 = vcombine.low %v1701, %v1707
      %v1738 = vcombine.high %v1701, %v1707
      %v1740 = vunpack.c.l.s4 1983009808
      %v1741 = vunpack.c.0.s8 %v1740
      %v1742 = vlaneseq
      %v1743 = vshrl.u32 %v1742, 7
      %v1744 = vsub.s32 %v1741, %v1743
      %v1745 = vrot.slane %v1737, %v1744
      %v1747 = vunpack.c.l.s4 1983009808
      %v1748 = vunpack.c.0.s8 %v1747
      %v1749 = vlaneseq
      %v1750 = vshrl.u32 %v1749, 7
      %v1751 = vsub.s32 %v1748, %v1750
      %v1752 = vrot.slane %v1738, %v1751
      %v1753 = vcombine.low %v1710, %v1716
      %v1754 = vcombine.high %v1710, %v1716
      %v1756 = vunpack.c.l.s4 1983009808
      %v1757 = vunpack.c.0.s8 %v1756
      %v1758 = vlaneseq
      %v1759 = vshrl.u32 %v1758, 7
      %v1760 = vsub.s32 %v1757, %v1759
      %v1761 = vrot.slane %v1753, %v1760
      %v1763 = vunpack.c.l.s4 1983009808
      %v1764 = vunpack.c.0.s8 %v1763
      %v1765 = vlaneseq
      %v1766 = vshrl.u32 %v1765, 7
      %v1767 = vsub.s32 %v1764, %v1766
      %v1768 = vrot.slane %v1754, %v1767
      %v1769 = vcombine.low %v1713, %v1719
      %v1770 = vcombine.high %v1713, %v1719
      %v1772 = vunpack.c.l.s4 1983009808
      %v1773 = vunpack.c.0.s8 %v1772
      %v1774 = vlaneseq
      %v1775 = vshrl.u32 %v1774, 7
      %v1776 = vsub.s32 %v1773, %v1775
      %v1777 = vrot.slane %v1769, %v1776
      %v1779 = vunpack.c.l.s4 1983009808
      %v1780 = vunpack.c.0.s8 %v1779
      %v1781 = vlaneseq
      %v1782 = vshrl.u32 %v1781, 7
      %v1783 = vsub.s32 %v1780, %v1782
      %v1784 = vrot.slane %v1770, %v1783
      %v1785 = vcombine.low %v1729, %v1745
      %v1786 = vcombine.high %v1729, %v1745
      %v1788 = vunpack.c.l.s4 1934713408
      %v1789 = vunpack.c.0.s8 %v1788
      %v1790 = vlaneseq
      %v1791 = vshrl.u32 %v1790, 7
      %v1792 = vsub.s32 %v1789, %v1791
      %v1793 = vrot.slane %v1785, %v1792
      %v1795 = vunpack.c.l.s4 1934713408
      %v1796 = vunpack.c.0.s8 %v1795
      %v1797 = vlaneseq
      %v1798 = vshrl.u32 %v1797, 7
      %v1799 = vsub.s32 %v1796, %v1798
      %v1800 = vrot.slane %v1786, %v1799
      %v1801 = vcombine.low %v1736, %v1752
      %v1802 = vcombine.high %v1736, %v1752
      %v1804 = vunpack.c.l.s4 1934713408
      %v1805 = vunpack.c.0.s8 %v1804
      %v1806 = vlaneseq
      %v1807 = vshrl.u32 %v1806, 7
      %v1808 = vsub.s32 %v1805, %v1807
      %v1809 = vrot.slane %v1801, %v1808
      %v1811 = vunpack.c.l.s4 1934713408
      %v1812 = vunpack.c.0.s8 %v1811
      %v1813 = vlaneseq
      %v1814 = vshrl.u32 %v1813, 7
      %v1815 = vsub.s32 %v1812, %v1814
      %v1816 = vrot.slane %v1802, %v1815
      %v1817 = vcombine.low %v1761, %v1777
      %v1818 = vcombine.high %v1761, %v1777
      %v1820 = vunpack.c.l.s4 1934713408
      %v1821 = vunpack.c.0.s8 %v1820
      %v1822 = vlaneseq
      %v1823 = vshrl.u32 %v1822, 7
      %v1824 = vsub.s32 %v1821, %v1823
      %v1825 = vrot.slane %v1817, %v1824
      %v1827 = vunpack.c.l.s4 1934713408
      %v1828 = vunpack.c.0.s8 %v1827
      %v1829 = vlaneseq
      %v1830 = vshrl.u32 %v1829, 7
      %v1831 = vsub.s32 %v1828, %v1830
      %v1832 = vrot.slane %v1818, %v1831
      %v1833 = vcombine.low %v1768, %v1784
      %v1834 = vcombine.high %v1768, %v1784
      %v1836 = vunpack.c.l.s4 1934713408
      %v1837 = vunpack.c.0.s8 %v1836
      %v1838 = vlaneseq
      %v1839 = vshrl.u32 %v1838, 7
      %v1840 = vsub.s32 %v1837, %v1839
      %v1841 = vrot.slane %v1833, %v1840
      %v1843 = vunpack.c.l.s4 1934713408
      %v1844 = vunpack.c.0.s8 %v1843
      %v1845 = vlaneseq
      %v1846 = vshrl.u32 %v1845, 7
      %v1847 = vsub.s32 %v1844, %v1846
      %v1848 = vrot.slane %v1834, %v1847
      %v1849 = vcombine.low %v1793, %v1825
      %v1850 = vcombine.high %v1793, %v1825
      %v1851 = vcombine.low %v1800, %v1832
      %v1852 = vcombine.high %v1800, %v1832
      %v1853 = vcombine.low %v1809, %v1841
      %v1854 = vcombine.high %v1809, %v1841
      %v1855 = vcombine.low %v1816, %v1848
      %v1856 = vcombine.high %v1816, %v1848
      %v1857 = vlaneseq
      %v1858 = vshrl.u32 %v1857, 7
      %v1859 = vsub.s32 0, %v1858
      %v1860 = vrot.slane %v497, %v1859
      %v1861 = vlaneseq
      %v1862 = vshrl.u32 %v1861, 7
      %v1863 = vsub.s32 0, %v1862
      %v1864 = vrot.slane %v511, %v1863
      %v1865 = vlaneseq
      %v1866 = vshrl.u32 %v1865, 7
      %v1867 = vsub.s32 0, %v1866
      %v1868 = vrot.slane %v519, %v1867
      %v1869 = vlaneseq
      %v1870 = vshrl.u32 %v1869, 7
      %v1871 = vsub.s32 0, %v1870
      %v1872 = vrot.slane %v521, %v1871
      %v1873 = vlaneseq
      %v1874 = vshrl.u32 %v1873, 7
      %v1875 = vsub.s32 0, %v1874
      %v1876 = vrot.slane %v504, %v1875
      %v1877 = vlaneseq
      %v1878 = vshrl.u32 %v1877, 7
      %v1879 = vsub.s32 0, %v1878
      %v1880 = vrot.slane %v518, %v1879
      %v1881 = vlaneseq
      %v1882 = vshrl.u32 %v1881, 7
      %v1883 = vsub.s32 0, %v1882
      %v1884 = vrot.slane %v520, %v1883
      %v1885 = vlaneseq
      %v1886 = vshrl.u32 %v1885, 7
      %v1887 = vsub.s32 0, %v1886
      %v1888 = vrot.slane %v522, %v1887
      %1889 = vset.pattern.permute.xlu0 0
      %1890 = vperm.xlu0 %1889, %v1860
      %v1891 = vpop.permute.xlu0 %1890
      %1893 = vset.pattern.permute.xlu0 0
      %1894 = vperm.xlu0 %1893, %v1864
      %v1895 = vpop.permute.xlu0 %1894
      %1897 = vset.pattern.permute.xlu0 0
      %1898 = vperm.xlu0 %1897, %v1868
      %v1899 = vpop.permute.xlu0 %1898
      %1901 = vset.pattern.permute.xlu0 0
      %1902 = vperm.xlu0 %1901, %v1872
      %v1903 = vpop.permute.xlu0 %1902
      %1905 = vset.pattern.permute.xlu0 0
      %1906 = vperm.xlu0 %1905, %v1876
      %v1907 = vpop.permute.xlu0 %1906
      %1909 = vset.pattern.permute.xlu0 0
      %1910 = vperm.xlu0 %1909, %v1880
      %v1911 = vpop.permute.xlu0 %1910
      %1913 = vset.pattern.permute.xlu0 0
      %1914 = vperm.xlu0 %1913, %v1884
      %v1915 = vpop.permute.xlu0 %1914
      %1917 = vset.pattern.permute.xlu0 0
      %1918 = vperm.xlu0 %1917, %v1888
      %v1919 = vpop.permute.xlu0 %1918
      %v1921 = vadd.f32 %v1849, %v1891
      %v1922 = vadd.f32 %v1850, %v1895
      %v1923 = vadd.f32 %v1851, %v1899
      %v1924 = vadd.f32 %v1852, %v1903
      %v1925 = vadd.f32 %v1853, %v1907
      %v1926 = vadd.f32 %v1854, %v1911
      %v1927 = vadd.f32 %v1855, %v1915
      %v1928 = vadd.f32 %v1856, %v1919
      %1929 = vxpose.xlu0.b32.start [1/16] %v1921, 128
      %1930 = vxpose.xlu0.b32.cont [2/16] 0.0, 128
      %1931 = vxpose.xlu0.b32.cont [3/16] 0.0, 128
      %1932 = vxpose.xlu0.b32.cont [4/16] 0.0, 128
      %1933 = vxpose.xlu0.b32.cont [5/16] 0.0, 128
      %1934 = vxpose.xlu0.b32.cont [6/16] 0.0, 128
      %1935 = vxpose.xlu0.b32.cont [7/16] 0.0, 128
      %1936 = vxpose.xlu0.b32.cont [8/16] 0.0, 128
      %1937 = vxpose.xlu0.b32.cont [9/16] 0.0, 128
      %1938 = vxpose.xlu0.b32.cont [10/16] 0.0, 128
      %1939 = vxpose.xlu0.b32.cont [11/16] 0.0, 128
      %1940 = vxpose.xlu0.b32.cont [12/16] 0.0, 128
      %1941 = vxpose.xlu0.b32.cont [13/16] 0.0, 128
      %1942 = vxpose.xlu0.b32.cont [14/16] 0.0, 128
      %1943 = vxpose.xlu0.b32.cont [15/16] 0.0, 128
      %1944 = vxpose.xlu0.b32.end [16/16] 0.0, 128
      %v1945 = vpop.trf.xlu0
      %v1946 = vpop.trf.xlu0
      %v1947 = vpop.trf.xlu0
      %v1948 = vpop.trf.xlu0
      %v1949 = vpop.trf.xlu0
      %v1950 = vpop.trf.xlu0
      %v1951 = vpop.trf.xlu0
      %v1952 = vpop.trf.xlu0
      %v1953 = vpop.trf.xlu0
      %v1954 = vpop.trf.xlu0
      %v1955 = vpop.trf.xlu0
      %v1956 = vpop.trf.xlu0
      %v1957 = vpop.trf.xlu0
      %v1958 = vpop.trf.xlu0
      %v1959 = vpop.trf.xlu0
      %v1960 = vpop.trf.xlu0
      %1961 = vxpose.xlu0.b32.start [1/16] %v1922, 128
      %1962 = vxpose.xlu0.b32.cont [2/16] 0.0, 128
      %1963 = vxpose.xlu0.b32.cont [3/16] 0.0, 128
      %1964 = vxpose.xlu0.b32.cont [4/16] 0.0, 128
      %1965 = vxpose.xlu0.b32.cont [5/16] 0.0, 128
      %1966 = vxpose.xlu0.b32.cont [6/16] 0.0, 128
      %1967 = vxpose.xlu0.b32.cont [7/16] 0.0, 128
      %1968 = vxpose.xlu0.b32.cont [8/16] 0.0, 128
      %1969 = vxpose.xlu0.b32.cont [9/16] 0.0, 128
      %1970 = vxpose.xlu0.b32.cont [10/16] 0.0, 128
      %1971 = vxpose.xlu0.b32.cont [11/16] 0.0, 128
      %1972 = vxpose.xlu0.b32.cont [12/16] 0.0, 128
      %1973 = vxpose.xlu0.b32.cont [13/16] 0.0, 128
      %1974 = vxpose.xlu0.b32.cont [14/16] 0.0, 128
      %1975 = vxpose.xlu0.b32.cont [15/16] 0.0, 128
      %1976 = vxpose.xlu0.b32.end [16/16] 0.0, 128
      %v1977 = vpop.trf.xlu0
      %v1978 = vpop.trf.xlu0
      %v1979 = vpop.trf.xlu0
      %v1980 = vpop.trf.xlu0
      %v1981 = vpop.trf.xlu0
      %v1982 = vpop.trf.xlu0
      %v1983 = vpop.trf.xlu0
      %v1984 = vpop.trf.xlu0
      %v1985 = vpop.trf.xlu0
      %v1986 = vpop.trf.xlu0
      %v1987 = vpop.trf.xlu0
      %v1988 = vpop.trf.xlu0
      %v1989 = vpop.trf.xlu0
      %v1990 = vpop.trf.xlu0
      %v1991 = vpop.trf.xlu0
      %v1992 = vpop.trf.xlu0
      %1993 = vxpose.xlu0.b32.start [1/16] %v1923, 128
      %1994 = vxpose.xlu0.b32.cont [2/16] 0.0, 128
      %1995 = vxpose.xlu0.b32.cont [3/16] 0.0, 128
      %1996 = vxpose.xlu0.b32.cont [4/16] 0.0, 128
      %1997 = vxpose.xlu0.b32.cont [5/16] 0.0, 128
      %1998 = vxpose.xlu0.b32.cont [6/16] 0.0, 128
      %1999 = vxpose.xlu0.b32.cont [7/16] 0.0, 128
      %2000 = vxpose.xlu0.b32.cont [8/16] 0.0, 128
      %2001 = vxpose.xlu0.b32.cont [9/16] 0.0, 128
      %2002 = vxpose.xlu0.b32.cont [10/16] 0.0, 128
      %2003 = vxpose.xlu0.b32.cont [11/16] 0.0, 128
      %2004 = vxpose.xlu0.b32.cont [12/16] 0.0, 128
      %2005 = vxpose.xlu0.b32.cont [13/16] 0.0, 128
      %2006 = vxpose.xlu0.b32.cont [14/16] 0.0, 128
      %2007 = vxpose.xlu0.b32.cont [15/16] 0.0, 128
      %2008 = vxpose.xlu0.b32.end [16/16] 0.0, 128
      %v2009 = vpop.trf.xlu0
      %v2010 = vpop.trf.xlu0
      %v2011 = vpop.trf.xlu0
      %v2012 = vpop.trf.xlu0
      %v2013 = vpop.trf.xlu0
      %v2014 = vpop.trf.xlu0
      %v2015 = vpop.trf.xlu0
      %v2016 = vpop.trf.xlu0
      %v2017 = vpop.trf.xlu0
      %v2018 = vpop.trf.xlu0
      %v2019 = vpop.trf.xlu0
      %v2020 = vpop.trf.xlu0
      %v2021 = vpop.trf.xlu0
      %v2022 = vpop.trf.xlu0
      %v2023 = vpop.trf.xlu0
      %v2024 = vpop.trf.xlu0
      %2025 = vxpose.xlu0.b32.start [1/16] %v1924, 128
      %2026 = vxpose.xlu0.b32.cont [2/16] 0.0, 128
      %2027 = vxpose.xlu0.b32.cont [3/16] 0.0, 128
      %2028 = vxpose.xlu0.b32.cont [4/16] 0.0, 128
      %2029 = vxpose.xlu0.b32.cont [5/16] 0.0, 128
      %2030 = vxpose.xlu0.b32.cont [6/16] 0.0, 128
      %2031 = vxpose.xlu0.b32.cont [7/16] 0.0, 128
      %2032 = vxpose.xlu0.b32.cont [8/16] 0.0, 128
      %2033 = vxpose.xlu0.b32.cont [9/16] 0.0, 128
      %2034 = vxpose.xlu0.b32.cont [10/16] 0.0, 128
      %2035 = vxpose.xlu0.b32.cont [11/16] 0.0, 128
      %2036 = vxpose.xlu0.b32.cont [12/16] 0.0, 128
      %2037 = vxpose.xlu0.b32.cont [13/16] 0.0, 128
      %2038 = vxpose.xlu0.b32.cont [14/16] 0.0, 128
      %2039 = vxpose.xlu0.b32.cont [15/16] 0.0, 128
      %2040 = vxpose.xlu0.b32.end [16/16] 0.0, 128
      %v2041 = vpop.trf.xlu0
      %v2042 = vpop.trf.xlu0
      %v2043 = vpop.trf.xlu0
      %v2044 = vpop.trf.xlu0
      %v2045 = vpop.trf.xlu0
      %v2046 = vpop.trf.xlu0
      %v2047 = vpop.trf.xlu0
      %v2048 = vpop.trf.xlu0
      %v2049 = vpop.trf.xlu0
      %v2050 = vpop.trf.xlu0
      %v2051 = vpop.trf.xlu0
      %v2052 = vpop.trf.xlu0
      %v2053 = vpop.trf.xlu0
      %v2054 = vpop.trf.xlu0
      %v2055 = vpop.trf.xlu0
      %v2056 = vpop.trf.xlu0
      %2057 = vxpose.xlu0.b32.start [1/16] %v1925, 128
      %2058 = vxpose.xlu0.b32.cont [2/16] 0.0, 128
      %2059 = vxpose.xlu0.b32.cont [3/16] 0.0, 128
      %2060 = vxpose.xlu0.b32.cont [4/16] 0.0, 128
      %2061 = vxpose.xlu0.b32.cont [5/16] 0.0, 128
      %2062 = vxpose.xlu0.b32.cont [6/16] 0.0, 128
      %2063 = vxpose.xlu0.b32.cont [7/16] 0.0, 128
      %2064 = vxpose.xlu0.b32.cont [8/16] 0.0, 128
      %2065 = vxpose.xlu0.b32.cont [9/16] 0.0, 128
      %2066 = vxpose.xlu0.b32.cont [10/16] 0.0, 128
      %2067 = vxpose.xlu0.b32.cont [11/16] 0.0, 128
      %2068 = vxpose.xlu0.b32.cont [12/16] 0.0, 128
      %2069 = vxpose.xlu0.b32.cont [13/16] 0.0, 128
      %2070 = vxpose.xlu0.b32.cont [14/16] 0.0, 128
      %2071 = vxpose.xlu0.b32.cont [15/16] 0.0, 128
      %2072 = vxpose.xlu0.b32.end [16/16] 0.0, 128
      %v2073 = vpop.trf.xlu0
      %v2074 = vpop.trf.xlu0
      %v2075 = vpop.trf.xlu0
      %v2076 = vpop.trf.xlu0
      %v2077 = vpop.trf.xlu0
      %v2078 = vpop.trf.xlu0
      %v2079 = vpop.trf.xlu0
      %v2080 = vpop.trf.xlu0
      %v2081 = vpop.trf.xlu0
      %v2082 = vpop.trf.xlu0
      %v2083 = vpop.trf.xlu0
      %v2084 = vpop.trf.xlu0
      %v2085 = vpop.trf.xlu0
      %v2086 = vpop.trf.xlu0
      %v2087 = vpop.trf.xlu0
      %v2088 = vpop.trf.xlu0
      %2089 = vxpose.xlu0.b32.start [1/16] %v1926, 128
      %2090 = vxpose.xlu0.b32.cont [2/16] 0.0, 128
      %2091 = vxpose.xlu0.b32.cont [3/16] 0.0, 128
      %2092 = vxpose.xlu0.b32.cont [4/16] 0.0, 128
      %2093 = vxpose.xlu0.b32.cont [5/16] 0.0, 128
      %2094 = vxpose.xlu0.b32.cont [6/16] 0.0, 128
      %2095 = vxpose.xlu0.b32.cont [7/16] 0.0, 128
      %2096 = vxpose.xlu0.b32.cont [8/16] 0.0, 128
      %2097 = vxpose.xlu0.b32.cont [9/16] 0.0, 128
      %2098 = vxpose.xlu0.b32.cont [10/16] 0.0, 128
      %2099 = vxpose.xlu0.b32.cont [11/16] 0.0, 128
      %2100 = vxpose.xlu0.b32.cont [12/16] 0.0, 128
      %2101 = vxpose.xlu0.b32.cont [13/16] 0.0, 128
      %2102 = vxpose.xlu0.b32.cont [14/16] 0.0, 128
      %2103 = vxpose.xlu0.b32.cont [15/16] 0.0, 128
      %2104 = vxpose.xlu0.b32.end [16/16] 0.0, 128
      %v2105 = vpop.trf.xlu0
      %v2106 = vpop.trf.xlu0
      %v2107 = vpop.trf.xlu0
      %v2108 = vpop.trf.xlu0
      %v2109 = vpop.trf.xlu0
      %v2110 = vpop.trf.xlu0
      %v2111 = vpop.trf.xlu0
      %v2112 = vpop.trf.xlu0
      %v2113 = vpop.trf.xlu0
      %v2114 = vpop.trf.xlu0
      %v2115 = vpop.trf.xlu0
      %v2116 = vpop.trf.xlu0
      %v2117 = vpop.trf.xlu0
      %v2118 = vpop.trf.xlu0
      %v2119 = vpop.trf.xlu0
      %v2120 = vpop.trf.xlu0
      %2121 = vxpose.xlu0.b32.start [1/16] %v1927, 128
      %2122 = vxpose.xlu0.b32.cont [2/16] 0.0, 128
      %2123 = vxpose.xlu0.b32.cont [3/16] 0.0, 128
      %2124 = vxpose.xlu0.b32.cont [4/16] 0.0, 128
      %2125 = vxpose.xlu0.b32.cont [5/16] 0.0, 128
      %2126 = vxpose.xlu0.b32.cont [6/16] 0.0, 128
      %2127 = vxpose.xlu0.b32.cont [7/16] 0.0, 128
      %2128 = vxpose.xlu0.b32.cont [8/16] 0.0, 128
      %2129 = vxpose.xlu0.b32.cont [9/16] 0.0, 128
      %2130 = vxpose.xlu0.b32.cont [10/16] 0.0, 128
      %2131 = vxpose.xlu0.b32.cont [11/16] 0.0, 128
      %2132 = vxpose.xlu0.b32.cont [12/16] 0.0, 128
      %2133 = vxpose.xlu0.b32.cont [13/16] 0.0, 128
      %2134 = vxpose.xlu0.b32.cont [14/16] 0.0, 128
      %2135 = vxpose.xlu0.b32.cont [15/16] 0.0, 128
      %2136 = vxpose.xlu0.b32.end [16/16] 0.0, 128
      %v2137 = vpop.trf.xlu0
      %v2138 = vpop.trf.xlu0
      %v2139 = vpop.trf.xlu0
      %v2140 = vpop.trf.xlu0
      %v2141 = vpop.trf.xlu0
      %v2142 = vpop.trf.xlu0
      %v2143 = vpop.trf.xlu0
      %v2144 = vpop.trf.xlu0
      %v2145 = vpop.trf.xlu0
      %v2146 = vpop.trf.xlu0
      %v2147 = vpop.trf.xlu0
      %v2148 = vpop.trf.xlu0
      %v2149 = vpop.trf.xlu0
      %v2150 = vpop.trf.xlu0
      %v2151 = vpop.trf.xlu0
      %v2152 = vpop.trf.xlu0
      %2153 = vxpose.xlu0.b32.start [1/16] %v1928, 128
      %2154 = vxpose.xlu0.b32.cont [2/16] 0.0, 128
      %2155 = vxpose.xlu0.b32.cont [3/16] 0.0, 128
      %2156 = vxpose.xlu0.b32.cont [4/16] 0.0, 128
      %2157 = vxpose.xlu0.b32.cont [5/16] 0.0, 128
      %2158 = vxpose.xlu0.b32.cont [6/16] 0.0, 128
      %2159 = vxpose.xlu0.b32.cont [7/16] 0.0, 128
      %2160 = vxpose.xlu0.b32.cont [8/16] 0.0, 128
      %2161 = vxpose.xlu0.b32.cont [9/16] 0.0, 128
      %2162 = vxpose.xlu0.b32.cont [10/16] 0.0, 128
      %2163 = vxpose.xlu0.b32.cont [11/16] 0.0, 128
      %2164 = vxpose.xlu0.b32.cont [12/16] 0.0, 128
      %2165 = vxpose.xlu0.b32.cont [13/16] 0.0, 128
      %2166 = vxpose.xlu0.b32.cont [14/16] 0.0, 128
      %2167 = vxpose.xlu0.b32.cont [15/16] 0.0, 128
      %2168 = vxpose.xlu0.b32.end [16/16] 0.0, 128
      %v2169 = vpop.trf.xlu0
      %v2170 = vpop.trf.xlu0
      %v2171 = vpop.trf.xlu0
      %v2172 = vpop.trf.xlu0
      %v2173 = vpop.trf.xlu0
      %v2174 = vpop.trf.xlu0
      %v2175 = vpop.trf.xlu0
      %v2176 = vpop.trf.xlu0
      %v2177 = vpop.trf.xlu0
      %v2178 = vpop.trf.xlu0
      %v2179 = vpop.trf.xlu0
      %v2180 = vpop.trf.xlu0
      %v2181 = vpop.trf.xlu0
      %v2182 = vpop.trf.xlu0
      %v2183 = vpop.trf.xlu0
      %v2184 = vpop.trf.xlu0
      %2185 = vst.msk [vmem:[%s197] sm:$0xff] %vm1052, %v1945
      %2186 = vst.msk [vmem:[%s197 + $0x8] sm:$0xff] %vm1052, %v1946
      %2187 = vst.msk [vmem:[%s197 + $0x10] sm:$0xff] %vm1052, %v1977
      %2188 = vst.msk [vmem:[%s197 + $0x18] sm:$0xff] %vm1052, %v1978
      %2189 = vst.msk [vmem:[%s197 + $0x20] sm:$0xff] %vm1052, %v2009
      %2190 = vst.msk [vmem:[%s197 + $0x28] sm:$0xff] %vm1052, %v2010
      %2191 = vst.msk [vmem:[%s197 + $0x30] sm:$0xff] %vm1052, %v2041
      %2192 = vst.msk [vmem:[%s197 + $0x38] sm:$0xff] %vm1052, %v2042
      %2193 = vst.msk [vmem:[%s197 + $0x40] sm:$0xff] %vm1052, %v2073
      %2194 = vst.msk [vmem:[%s197 + $0x48] sm:$0xff] %vm1052, %v2074
      %2195 = vst.msk [vmem:[%s197 + $0x50] sm:$0xff] %vm1052, %v2105
      %2196 = vst.msk [vmem:[%s197 + $0x58] sm:$0xff] %vm1052, %v2106
      %2197 = vst.msk [vmem:[%s197 + $0x60] sm:$0xff] %vm1052, %v2137
      %2198 = vst.msk [vmem:[%s197 + $0x68] sm:$0xff] %vm1052, %v2138
      %2199 = vst.msk [vmem:[%s197 + $0x70] sm:$0xff] %vm1052, %v2169
      %2200 = vst.msk [vmem:[%s197 + $0x78] sm:$0xff] %vm1052, %v2170
      %p2201 = scmp.lt.s32.totalorder %s15, 3
      %s2202 = scalar_select %p2201, %s15, 3
      %s2203 = smul.addr %s2202, 16
      %s2204 = smul.addr %s2203, 8
      %s2205 = scalar_lea.vmem %s4, %s2204
      // Predicated region
      $region37: #{tpu_custom_call.1} parent=35 // pred_check
        %p2206 = pneg %p122
      $region38: #{tpu_custom_call.1} parent=35 // pred_check_branch
        %2208 = sbr.rel (%p2206) target = $region40
      $region39: #{tpu_custom_call.1} parent=35 // pred_region
        _
      $region40: #{tpu_custom_call.1} parent=35 // pred_fallthru
        _
    $region36: #{tpu_custom_call.1} parent=5 // pred_fallthru
      _
    %p2209 = scmp.le.s32.totalorder 2, %s10
    // Predicated region
    $region41: #{tpu_custom_call.1} parent=5 // pred_check
      %p2210 = pneg %p2209
    $region42: #{tpu_custom_call.1} parent=5 // pred_check_branch
      %2212 = sbr.rel (%p2210) target = $region44
    $region43: #{tpu_custom_call.1} parent=5 // pred_region
      %s2213 = ssub.s32 %s10, 2
      // Predicated region
      $region45: #{tpu_custom_call.1} parent=43 // pred_check
        %p2214 = pneg %p128
      $region46: #{tpu_custom_call.1} parent=43 // pred_check_branch
        %2216 = sbr.rel (%p2214) target = $region48
      $region47: #{tpu_custom_call.1} parent=43 // pred_region
        %p2217 = scmp.lt.s32.totalorder %s16, 3
        %s2218 = scalar_select %p2217, %s16, 3
        %s2219 = smul.addr %s2218, 16
        %s2220 = smul.addr %s2219, 8
        %s2221 = scalar_lea.vmem %s4, %s2220
      $region48: #{tpu_custom_call.1} parent=43 // pred_fallthru
        _
    $region44: #{tpu_custom_call.1} parent=5 // pred_fallthru
      _
  $region6: #{tpu_custom_call.1} parent=0 // loop_footer
    %s14 = sadd.s32 1, %s10
  $region7: #{tpu_custom_call.1} parent=0 // loop_footer_branch
    %9 = sbr.rel target = $region3
  $region8: #{tpu_custom_call.1} parent=0 // loop_exit
    _

</llo_original>
